<compile_context>
chip_gen: v5e
topology: v5e:2x2
jax: 0.10.0
libtpu: 0.0.40
codegen_flags: <defaults>
</compile_context>

<pallas_src>
import math

import jax
import jax.numpy as jnp
from jax.experimental import pallas as pl
from jax.experimental.pallas import tpu as pltpu


def _leaky_relu(x, slope=0.2):
    return jnp.where(x > 0, x, slope * x)


def _dense(h, w_bf16, b_f32):
    # bf16 operands on the MXU, f32 accumulation, f32 bias add.
    return jnp.dot(h.astype(jnp.bfloat16), w_bf16,
                   preferred_element_type=jnp.float32) + b_f32


def vae_forward_kernel(
    x_ref, eps_ref,
    w1, b1, w2, b2, w3, b3,                 # encoder
    wms, bms,                               # fused mu|sigma head
    wd1, bd1, wd2, bd2, wd3, bd3, wd4, bd4, # decoder
    ms_ref, out_ref,
):
    bn = eps_ref.shape[1]
    x = x_ref[...]                          # already bf16 (cast in wrapper)

    # ---- encode: Linear + LeakyReLU(0.2) x3 ----
    h = _leaky_relu(_dense(x, w1[...], b1[...]))
    h = _leaky_relu(_dense(h, w2[...], b2[...]))
    h = _leaky_relu(_dense(h, w3[...], b3[...]))

    # ---- fused bottleneck heads: single (h3, 2*bn) matmul, single lane-dense store ----
    ms = _dense(h, wms[...], bms[...])
    ms_ref[...] = ms                        # mu|sigma split happens in JAX glue
    mu = ms[:, :bn]
    sigma = ms[:, bn:]

    # ---- reparameterization: mu + exp(sigma * 0.5) * eps (f32) ----
    z = mu + jnp.exp(sigma * 0.5) * eps_ref[...]

    # ---- decode: Linear + ReLU x3, final Linear + Sigmoid ----
    d = jnp.maximum(_dense(z, wd1[...], bd1[...]), 0.0)
    d = jnp.maximum(_dense(d, wd2[...], bd2[...]), 0.0)
    d = jnp.maximum(_dense(d, wd3[...], bd3[...]), 0.0)
    logits = _dense(d, wd4[...], bd4[...])
    # sigmoid(x) == 0.5*tanh(x/2)+0.5 : one EUP op, no exp overflow for large |x|
    out_ref[...] = (0.5 * jnp.tanh(0.5 * logits) + 0.5).astype(out_ref.dtype)


def make_params(key, input_size, h1, h2, h3, bottle_neck):
    """PyTorch-style uniform(-1/sqrt(fan_in), 1/sqrt(fan_in)) init.

    Weights are returned in bf16 (MXU path), biases in f32.
    The mu and sigma heads are fused into one (h3, 2*bottle_neck) linear.
    """
    dims = [
        (input_size, h1), (h1, h2), (h2, h3),                     # encoder
        (h3, 2 * bottle_neck),                                    # fused mu|sigma head
        (bottle_neck, h3), (h3, h2), (h2, h1), (h1, input_size),  # decoder
    ]
    params = []
    for fin, fout in dims:
        key, kw, kb = jax.random.split(key, 3)
        bound = 1.0 / math.sqrt(fin)
        w = jax.random.uniform(kw, (fin, fout), jnp.float32, -bound, bound)
        b = jax.random.uniform(kb, (1, fout), jnp.float32, -bound, bound)
        params += [w.astype(jnp.bfloat16), b]
    return params


def _round_up(n, m):
    return ((n + m - 1) // m) * m


def _choose_tb(B):
    """Batch tile: multiple of 8 (sublanes), <= 512 (fits default scoped VMEM on
    v5e/v6e/v7x with bf16 I/O), and >= 2 grid steps whenever B allows it so the
    'parallel' axis can shard across both v7x TensorCores."""
    if B <= 8:
        return B
    tb = min(512, _round_up(B, 8))
    if tb >= B and B >= 16:
        tb = _round_up(pl.cdiv(B, 2), 8)     # split into (at least) 2 tiles
    return tb


def autoencoder_forward(x, eps, params, *, tb=None):
    B, input_size = x.shape
    bottle_neck = eps.shape[1]
    if tb is None:
        tb = _choose_tb(B)
    nb = pl.cdiv(B, tb)

    # x is quantized to bf16 for the MXU anyway -> halve the dominant HBM read.
    x_bf16 = x.astype(jnp.bfloat16)

    row = lambda i: (i, 0)                   # batch-tiled operands
    const = lambda i: (0, 0)                 # weights/biases: resident in VMEM

    in_specs = [
        pl.BlockSpec((tb, input_size), row),           # x (bf16)
        pl.BlockSpec((tb, bottle_neck), row),          # eps (f32)
    ] + [pl.BlockSpec(p.shape, const) for p in params]

    out_specs = [
        pl.BlockSpec((tb, 2 * bottle_neck), row),      # fused mu|sigma (f32)
        pl.BlockSpec((tb, input_size), row),           # decoded image (bf16)
    ]
    out_shapes = (
        jax.ShapeDtypeStruct((B, 2 * bottle_neck), jnp.float32),
        jax.ShapeDtypeStruct((B, input_size), jnp.bfloat16),
    )

    # Advisory cost hint: kernel is HBM / step-overhead bound, not FLOP bound.
    weight_elems = sum(int(p.shape[0]) * int(p.shape[1]) for p in params[0::2])
    param_bytes = sum(int(p.size) * p.dtype.itemsize for p in params)
    io_bytes_per_row = (2 * input_size          # x bf16 in
                        + 4 * bottle_neck       # eps f32 in
                        + 4 * 2 * bottle_neck   # mu|sigma f32 out
                        + 2 * input_size)       # decoded bf16 out
    cost = pl.CostEstimate(
        flops=2 * B * weight_elems,
        transcendentals=B * (bottle_neck + input_size),  # exp + tanh
        bytes_accessed=B * io_bytes_per_row + param_bytes,
    )

    ms, dec = pl.pallas_call(
        vae_forward_kernel,
        grid=(nb,),
        in_specs=in_specs,
        out_specs=out_specs,
        out_shape=out_shapes,
        compiler_params=pltpu.CompilerParams(
            dimension_semantics=("parallel",),           # megacore sharding on v7x
        ),
        cost_estimate=cost,
    )(x_bf16, eps, *params)

    # glue: split fused head (free XLA slices) and reshape like x.view((-1,1,28,28)).
    mu = ms[:, :bottle_neck]
    sigma = ms[:, bottle_neck:]
    img = dec.reshape((-1, 1, 28, 28))       # bf16; cast downstream only if f32 needed
    return mu, sigma, img


def reference_forward(x, eps, params):
    """Plain-JAX reference mirroring the kernel's bf16-matmul / f32-elementwise math."""
    (w1, b1, w2, b2, w3, b3, wms, bms,
     wd1, bd1, wd2, bd2, wd3, bd3, wd4, bd4) = params
    bn = eps.shape[1]
    lrelu = lambda v: jnp.where(v > 0, v, 0.2 * v)
    h = lrelu(_dense(x, w1, b1))
    h = lrelu(_dense(h, w2, b2))
    h = lrelu(_dense(h, w3, b3))
    ms = _dense(h, wms, bms)
    mu, sigma = ms[:, :bn], ms[:, bn:]
    z = mu + jnp.exp(sigma * 0.5) * eps
    d = jnp.maximum(_dense(z, wd1, bd1), 0.0)
    d = jnp.maximum(_dense(d, wd2, bd2), 0.0)
    d = jnp.maximum(_dense(d, wd3, bd3), 0.0)
    out = jax.nn.sigmoid(_dense(d, wd4, bd4))
    return mu, sigma, out.reshape((-1, 1, 28, 28))


if __name__ == "__main__":
    # Module dims: input_size must be 784 because forward reshapes to (-1,1,28,28).
    input_size, h1, h2, h3, bottle_neck = 784, 128, 64, 32, 16
    batch = 8

    key = jax.random.PRNGKey(0)
    key, kx, keps, kp = jax.random.split(key, 4)

    x = jax.random.uniform(kx, (batch, input_size), jnp.float32)      # flattened images
    eps = jax.random.normal(keps, (batch, bottle_neck), jnp.float32)  # torch.randn(*mu.size())
    params = make_params(kp, input_size, h1, h2, h3, bottle_neck)

    mu, sigma, img = autoencoder_forward(x, eps, params)
    jax.block_until_ready((mu, sigma, img))

    # NOTE: the reference uses the same bf16-weight matmuls, so this validates the
    # kernel against its numerical mirror (bf16 weight quantization vs. an f32
    # PyTorch module is a separate, model-level accuracy question).
    mu_r, sigma_r, img_r = reference_forward(x, eps, params)
    assert mu.shape == (batch, bottle_neck)
    assert sigma.shape == (batch, bottle_neck)
    assert img.shape == (batch, 1, 28, 28)
    assert jnp.allclose(mu, mu_r, atol=2e-3, rtol=2e-3)
    assert jnp.allclose(sigma, sigma_r, atol=2e-3, rtol=2e-3)
    # image is emitted in bf16 (halves the dominant HBM write); compare in f32
    assert jnp.allclose(img.astype(jnp.float32), img_r, atol=1e-2, rtol=1e-2)

    print("KERNEL_OK")
</pallas_src>

<mosaic_0001>
module attributes {stable_mosaic.version = 11 : i64} {
  func.func @vae_forward_kernel(%arg0: i32, %arg1: memref<8x784xbf16, #tpu.memory_space<vmem>>, %arg2: memref<8x16xf32, #tpu.memory_space<vmem>>, %arg3: memref<784x128xbf16, #tpu.memory_space<vmem>>, %arg4: memref<1x128xf32, #tpu.memory_space<vmem>>, %arg5: memref<128x64xbf16, #tpu.memory_space<vmem>>, %arg6: memref<1x64xf32, #tpu.memory_space<vmem>>, %arg7: memref<64x32xbf16, #tpu.memory_space<vmem>>, %arg8: memref<1x32xf32, #tpu.memory_space<vmem>>, %arg9: memref<32x32xbf16, #tpu.memory_space<vmem>>, %arg10: memref<1x32xf32, #tpu.memory_space<vmem>>, %arg11: memref<16x32xbf16, #tpu.memory_space<vmem>>, %arg12: memref<1x32xf32, #tpu.memory_space<vmem>>, %arg13: memref<32x64xbf16, #tpu.memory_space<vmem>>, %arg14: memref<1x64xf32, #tpu.memory_space<vmem>>, %arg15: memref<64x128xbf16, #tpu.memory_space<vmem>>, %arg16: memref<1x128xf32, #tpu.memory_space<vmem>>, %arg17: memref<128x784xbf16, #tpu.memory_space<vmem>>, %arg18: memref<1x784xf32, #tpu.memory_space<vmem>>, %arg19: memref<8x32xf32, #tpu.memory_space<vmem>>, %arg20: memref<8x784xbf16, #tpu.memory_space<vmem>>) attributes {dimension_semantics = [#tpu.dimension_semantics<parallel>], iteration_bounds = array<i64: 1>, scalar_prefetch = 0 : i64, scratch_operands = 0 : i64, tpu.core_type = #tpu.core_type<tc>, window_params = [{transform_indices = @transform_0, window_bounds = array<i64: 8, 784>}, {transform_indices = @transform_1, window_bounds = array<i64: 8, 16>}, {pipeline_mode = #tpu.pipeline_mode<synchronous>, transform_indices = @transform_2, window_bounds = array<i64: 784, 128>}, {pipeline_mode = #tpu.pipeline_mode<synchronous>, transform_indices = @transform_3, window_bounds = array<i64: 1, 128>}, {pipeline_mode = #tpu.pipeline_mode<synchronous>, transform_indices = @transform_4, window_bounds = array<i64: 128, 64>}, {pipeline_mode = #tpu.pipeline_mode<synchronous>, transform_indices = @transform_5, window_bounds = array<i64: 1, 64>}, {pipeline_mode = #tpu.pipeline_mode<synchronous>, transform_indices = @transform_6, window_bounds = array<i64: 64, 32>}, {pipeline_mode = #tpu.pipeline_mode<synchronous>, transform_indices = @transform_7, window_bounds = array<i64: 1, 32>}, {pipeline_mode = #tpu.pipeline_mode<synchronous>, transform_indices = @transform_8, window_bounds = array<i64: 32, 32>}, {pipeline_mode = #tpu.pipeline_mode<synchronous>, transform_indices = @transform_9, window_bounds = array<i64: 1, 32>}, {pipeline_mode = #tpu.pipeline_mode<synchronous>, transform_indices = @transform_10, window_bounds = array<i64: 16, 32>}, {pipeline_mode = #tpu.pipeline_mode<synchronous>, transform_indices = @transform_11, window_bounds = array<i64: 1, 32>}, {pipeline_mode = #tpu.pipeline_mode<synchronous>, transform_indices = @transform_12, window_bounds = array<i64: 32, 64>}, {pipeline_mode = #tpu.pipeline_mode<synchronous>, transform_indices = @transform_13, window_bounds = array<i64: 1, 64>}, {pipeline_mode = #tpu.pipeline_mode<synchronous>, transform_indices = @transform_14, window_bounds = array<i64: 64, 128>}, {pipeline_mode = #tpu.pipeline_mode<synchronous>, transform_indices = @transform_15, window_bounds = array<i64: 1, 128>}, {pipeline_mode = #tpu.pipeline_mode<synchronous>, transform_indices = @transform_16, window_bounds = array<i64: 128, 784>}, {pipeline_mode = #tpu.pipeline_mode<synchronous>, transform_indices = @transform_17, window_bounds = array<i64: 1, 784>}, {transform_indices = @transform_18, window_bounds = array<i64: 8, 32>}, {transform_indices = @transform_19, window_bounds = array<i64: 8, 784>}]} {
    %c0 = arith.constant 0 : index
    %c0_0 = arith.constant 0 : index
    %0 = vector.load %arg1[%c0, %c0_0] : memref<8x784xbf16, #tpu.memory_space<vmem>>, vector<8x784xbf16>
    %c0_1 = arith.constant 0 : index
    %c0_2 = arith.constant 0 : index
    %1 = vector.load %arg3[%c0_1, %c0_2] : memref<784x128xbf16, #tpu.memory_space<vmem>>, vector<784x128xbf16>
    %c0_3 = arith.constant 0 : index
    %c0_4 = arith.constant 0 : index
    %2 = vector.load %arg4[%c0_3, %c0_4] : memref<1x128xf32, #tpu.memory_space<vmem>>, vector<1x128xf32>
    %cst = arith.constant dense<0.000000e+00> : vector<8x128xf32>
    %3 = tpu.matmul %0, %1, %cst {dimension_numbers = #tpu.dot_dimension_numbers<[1], [0], [0], [1], [0, 0, 1, 1], [], []>} : vector<8x784xbf16>, vector<784x128xbf16>, vector<8x128xf32> -> vector<8x128xf32>
    %4 = vector.broadcast %2 : vector<1x128xf32> to vector<8x128xf32>
    %5 = arith.addf %3, %4 : vector<8x128xf32>
    %cst_5 = arith.constant 0.000000e+00 : f32
    %6 = vector.broadcast %cst_5 : f32 to vector<8x128xf32>
    %7 = arith.cmpf ogt, %5, %6 : vector<8x128xf32>
    %cst_6 = arith.constant 2.000000e-01 : f32
    %8 = vector.broadcast %cst_6 : f32 to vector<8x128xf32>
    %9 = arith.mulf %8, %5 : vector<8x128xf32>
    %10 = arith.select %7, %5, %9 : vector<8x128xi1>, vector<8x128xf32>
    %c0_7 = arith.constant 0 : index
    %c0_8 = arith.constant 0 : index
    %11 = vector.load %arg5[%c0_7, %c0_8] : memref<128x64xbf16, #tpu.memory_space<vmem>>, vector<128x64xbf16>
    %c0_9 = arith.constant 0 : index
    %c0_10 = arith.constant 0 : index
    %12 = vector.load %arg6[%c0_9, %c0_10] : memref<1x64xf32, #tpu.memory_space<vmem>>, vector<1x64xf32>
    %13 = arith.truncf %10 : vector<8x128xf32> to vector<8x128xbf16>
    %cst_11 = arith.constant dense<0.000000e+00> : vector<8x64xf32>
    %14 = tpu.matmul %13, %11, %cst_11 {dimension_numbers = #tpu.dot_dimension_numbers<[1], [0], [0], [1], [0, 0, 1, 1], [], []>} : vector<8x128xbf16>, vector<128x64xbf16>, vector<8x64xf32> -> vector<8x64xf32>
    %15 = vector.broadcast %12 : vector<1x64xf32> to vector<8x64xf32>
    %16 = arith.addf %14, %15 : vector<8x64xf32>
    %cst_12 = arith.constant 0.000000e+00 : f32
    %17 = vector.broadcast %cst_12 : f32 to vector<8x64xf32>
    %18 = arith.cmpf ogt, %16, %17 : vector<8x64xf32>
    %cst_13 = arith.constant 2.000000e-01 : f32
    %19 = vector.broadcast %cst_13 : f32 to vector<8x64xf32>
    %20 = arith.mulf %19, %16 : vector<8x64xf32>
    %21 = arith.select %18, %16, %20 : vector<8x64xi1>, vector<8x64xf32>
    %c0_14 = arith.constant 0 : index
    %c0_15 = arith.constant 0 : index
    %22 = vector.load %arg7[%c0_14, %c0_15] : memref<64x32xbf16, #tpu.memory_space<vmem>>, vector<64x32xbf16>
    %c0_16 = arith.constant 0 : index
    %c0_17 = arith.constant 0 : index
    %23 = vector.load %arg8[%c0_16, %c0_17] : memref<1x32xf32, #tpu.memory_space<vmem>>, vector<1x32xf32>
    %24 = arith.truncf %21 : vector<8x64xf32> to vector<8x64xbf16>
    %cst_18 = arith.constant dense<0.000000e+00> : vector<8x32xf32>
    %25 = tpu.matmul %24, %22, %cst_18 {dimension_numbers = #tpu.dot_dimension_numbers<[1], [0], [0], [1], [0, 0, 1, 1], [], []>} : vector<8x64xbf16>, vector<64x32xbf16>, vector<8x32xf32> -> vector<8x32xf32>
    %26 = vector.broadcast %23 : vector<1x32xf32> to vector<8x32xf32>
    %27 = arith.addf %25, %26 : vector<8x32xf32>
    %cst_19 = arith.constant 0.000000e+00 : f32
    %28 = vector.broadcast %cst_19 : f32 to vector<8x32xf32>
    %29 = arith.cmpf ogt, %27, %28 : vector<8x32xf32>
    %cst_20 = arith.constant 2.000000e-01 : f32
    %30 = vector.broadcast %cst_20 : f32 to vector<8x32xf32>
    %31 = arith.mulf %30, %27 : vector<8x32xf32>
    %32 = arith.select %29, %27, %31 : vector<8x32xi1>, vector<8x32xf32>
    %c0_21 = arith.constant 0 : index
    %c0_22 = arith.constant 0 : index
    %33 = vector.load %arg9[%c0_21, %c0_22] : memref<32x32xbf16, #tpu.memory_space<vmem>>, vector<32x32xbf16>
    %c0_23 = arith.constant 0 : index
    %c0_24 = arith.constant 0 : index
    %34 = vector.load %arg10[%c0_23, %c0_24] : memref<1x32xf32, #tpu.memory_space<vmem>>, vector<1x32xf32>
    %35 = arith.truncf %32 : vector<8x32xf32> to vector<8x32xbf16>
    %cst_25 = arith.constant dense<0.000000e+00> : vector<8x32xf32>
    %36 = tpu.matmul %35, %33, %cst_25 {dimension_numbers = #tpu.dot_dimension_numbers<[1], [0], [0], [1], [0, 0, 1, 1], [], []>} : vector<8x32xbf16>, vector<32x32xbf16>, vector<8x32xf32> -> vector<8x32xf32>
    %37 = vector.broadcast %34 : vector<1x32xf32> to vector<8x32xf32>
    %38 = arith.addf %36, %37 : vector<8x32xf32>
    %c0_26 = arith.constant 0 : index
    %c0_27 = arith.constant 0 : index
    %39 = vector.load %arg19[%c0_26, %c0_27] : memref<8x32xf32, #tpu.memory_space<vmem>>, vector<8x32xf32>
    tpu.vector_store %arg19[%c0_26, %c0_27], %38 {strides = array<i32>} : memref<8x32xf32, #tpu.memory_space<vmem>>, vector<8x32xf32>,
    %40 = vector.extract_strided_slice %38 {offsets = [0, 0], sizes = [8, 16], strides = [1, 1]} : vector<8x32xf32> to vector<8x16xf32>
    %41 = vector.extract_strided_slice %38 {offsets = [0, 16], sizes = [8, 16], strides = [1, 1]} : vector<8x32xf32> to vector<8x16xf32>
    %cst_28 = arith.constant 5.000000e-01 : f32
    %42 = vector.broadcast %cst_28 : f32 to vector<8x16xf32>
    %43 = arith.mulf %41, %42 : vector<8x16xf32>
    %44 = math.exp %43 : vector<8x16xf32>
    %c0_29 = arith.constant 0 : index
    %c0_30 = arith.constant 0 : index
    %45 = vector.load %arg2[%c0_29, %c0_30] : memref<8x16xf32, #tpu.memory_space<vmem>>, vector<8x16xf32>
    %46 = arith.mulf %44, %45 : vector<8x16xf32>
    %47 = arith.addf %40, %46 : vector<8x16xf32>
    %c0_31 = arith.constant 0 : index
    %c0_32 = arith.constant 0 : index
    %48 = vector.load %arg11[%c0_31, %c0_32] : memref<16x32xbf16, #tpu.memory_space<vmem>>, vector<16x32xbf16>
    %c0_33 = arith.constant 0 : index
    %c0_34 = arith.constant 0 : index
    %49 = vector.load %arg12[%c0_33, %c0_34] : memref<1x32xf32, #tpu.memory_space<vmem>>, vector<1x32xf32>
    %50 = arith.truncf %47 : vector<8x16xf32> to vector<8x16xbf16>
    %cst_35 = arith.constant dense<0.000000e+00> : vector<8x32xf32>
    %51 = tpu.matmul %50, %48, %cst_35 {dimension_numbers = #tpu.dot_dimension_numbers<[1], [0], [0], [1], [0, 0, 1, 1], [], []>} : vector<8x16xbf16>, vector<16x32xbf16>, vector<8x32xf32> -> vector<8x32xf32>
    %52 = vector.broadcast %49 : vector<1x32xf32> to vector<8x32xf32>
    %53 = arith.addf %51, %52 : vector<8x32xf32>
    %cst_36 = arith.constant 0.000000e+00 : f32
    %54 = vector.broadcast %cst_36 : f32 to vector<8x32xf32>
    %55 = arith.maximumf %53, %54 : vector<8x32xf32>
    %c0_37 = arith.constant 0 : index
    %c0_38 = arith.constant 0 : index
    %56 = vector.load %arg13[%c0_37, %c0_38] : memref<32x64xbf16, #tpu.memory_space<vmem>>, vector<32x64xbf16>
    %c0_39 = arith.constant 0 : index
    %c0_40 = arith.constant 0 : index
    %57 = vector.load %arg14[%c0_39, %c0_40] : memref<1x64xf32, #tpu.memory_space<vmem>>, vector<1x64xf32>
    %58 = arith.truncf %55 : vector<8x32xf32> to vector<8x32xbf16>
    %cst_41 = arith.constant dense<0.000000e+00> : vector<8x64xf32>
    %59 = tpu.matmul %58, %56, %cst_41 {dimension_numbers = #tpu.dot_dimension_numbers<[1], [0], [0], [1], [0, 0, 1, 1], [], []>} : vector<8x32xbf16>, vector<32x64xbf16>, vector<8x64xf32> -> vector<8x64xf32>
    %60 = vector.broadcast %57 : vector<1x64xf32> to vector<8x64xf32>
    %61 = arith.addf %59, %60 : vector<8x64xf32>
    %cst_42 = arith.constant 0.000000e+00 : f32
    %62 = vector.broadcast %cst_42 : f32 to vector<8x64xf32>
    %63 = arith.maximumf %61, %62 : vector<8x64xf32>
    %c0_43 = arith.constant 0 : index
    %c0_44 = arith.constant 0 : index
    %64 = vector.load %arg15[%c0_43, %c0_44] : memref<64x128xbf16, #tpu.memory_space<vmem>>, vector<64x128xbf16>
    %c0_45 = arith.constant 0 : index
    %c0_46 = arith.constant 0 : index
    %65 = vector.load %arg16[%c0_45, %c0_46] : memref<1x128xf32, #tpu.memory_space<vmem>>, vector<1x128xf32>
    %66 = arith.truncf %63 : vector<8x64xf32> to vector<8x64xbf16>
    %cst_47 = arith.constant dense<0.000000e+00> : vector<8x128xf32>
    %67 = tpu.matmul %66, %64, %cst_47 {dimension_numbers = #tpu.dot_dimension_numbers<[1], [0], [0], [1], [0, 0, 1, 1], [], []>} : vector<8x64xbf16>, vector<64x128xbf16>, vector<8x128xf32> -> vector<8x128xf32>
    %68 = vector.broadcast %65 : vector<1x128xf32> to vector<8x128xf32>
    %69 = arith.addf %67, %68 : vector<8x128xf32>
    %cst_48 = arith.constant 0.000000e+00 : f32
    %70 = vector.broadcast %cst_48 : f32 to vector<8x128xf32>
    %71 = arith.maximumf %69, %70 : vector<8x128xf32>
    %c0_49 = arith.constant 0 : index
    %c0_50 = arith.constant 0 : index
    %72 = vector.load %arg17[%c0_49, %c0_50] : memref<128x784xbf16, #tpu.memory_space<vmem>>, vector<128x784xbf16>
    %c0_51 = arith.constant 0 : index
    %c0_52 = arith.constant 0 : index
    %73 = vector.load %arg18[%c0_51, %c0_52] : memref<1x784xf32, #tpu.memory_space<vmem>>, vector<1x784xf32>
    %74 = arith.truncf %71 : vector<8x128xf32> to vector<8x128xbf16>
    %cst_53 = arith.constant dense<0.000000e+00> : vector<8x784xf32>
    %75 = tpu.matmul %74, %72, %cst_53 {dimension_numbers = #tpu.dot_dimension_numbers<[1], [0], [0], [1], [0, 0, 1, 1], [], []>} : vector<8x128xbf16>, vector<128x784xbf16>, vector<8x784xf32> -> vector<8x784xf32>
    %76 = vector.broadcast %73 : vector<1x784xf32> to vector<8x784xf32>
    %77 = arith.addf %75, %76 : vector<8x784xf32>
    %cst_54 = arith.constant 5.000000e-01 : f32
    %78 = vector.broadcast %cst_54 : f32 to vector<8x784xf32>
    %79 = arith.mulf %78, %77 : vector<8x784xf32>
    %80 = math.tanh %79 : vector<8x784xf32>
    %cst_55 = arith.constant 5.000000e-01 : f32
    %81 = vector.broadcast %cst_55 : f32 to vector<8x784xf32>
    %82 = arith.mulf %81, %80 : vector<8x784xf32>
    %cst_56 = arith.constant 5.000000e-01 : f32
    %83 = vector.broadcast %cst_56 : f32 to vector<8x784xf32>
    %84 = arith.addf %82, %83 : vector<8x784xf32>
    %85 = arith.truncf %84 : vector<8x784xf32> to vector<8x784xbf16>
    %c0_57 = arith.constant 0 : index
    %c0_58 = arith.constant 0 : index
    %86 = vector.load %arg20[%c0_57, %c0_58] : memref<8x784xbf16, #tpu.memory_space<vmem>>, vector<8x784xbf16>
    tpu.vector_store %arg20[%c0_57, %c0_58], %85 {strides = array<i32>} : memref<8x784xbf16, #tpu.memory_space<vmem>>, vector<8x784xbf16>,
    return
  }
  func.func @transform_0(%arg0: i32) -> (i32, i32) {
    %c0_i32 = arith.constant 0 : i32
    %c0_i32_0 = arith.constant 0 : i32
    return %arg0, %c0_i32 : i32, i32
  }
  func.func @transform_1(%arg0: i32) -> (i32, i32) {
    %c0_i32 = arith.constant 0 : i32
    %c0_i32_0 = arith.constant 0 : i32
    return %arg0, %c0_i32 : i32, i32
  }
  func.func @transform_2(%arg0: i32) -> (i32, i32) {
    %c0_i32 = arith.constant 0 : i32
    %c0_i32_0 = arith.constant 0 : i32
    %c0_i32_1 = arith.constant 0 : i32
    return %c0_i32, %c0_i32_0 : i32, i32
  }
  func.func @transform_3(%arg0: i32) -> (i32, i32) {
    %c0_i32 = arith.constant 0 : i32
    %c0_i32_0 = arith.constant 0 : i32
    %c0_i32_1 = arith.constant 0 : i32
    return %c0_i32, %c0_i32_0 : i32, i32
  }
  func.func @transform_4(%arg0: i32) -> (i32, i32) {
    %c0_i32 = arith.constant 0 : i32
    %c0_i32_0 = arith.constant 0 : i32
    %c0_i32_1 = arith.constant 0 : i32
    return %c0_i32, %c0_i32_0 : i32, i32
  }
  func.func @transform_5(%arg0: i32) -> (i32, i32) {
    %c0_i32 = arith.constant 0 : i32
    %c0_i32_0 = arith.constant 0 : i32
    %c0_i32_1 = arith.constant 0 : i32
    return %c0_i32, %c0_i32_0 : i32, i32
  }
  func.func @transform_6(%arg0: i32) -> (i32, i32) {
    %c0_i32 = arith.constant 0 : i32
    %c0_i32_0 = arith.constant 0 : i32
    %c0_i32_1 = arith.constant 0 : i32
    return %c0_i32, %c0_i32_0 : i32, i32
  }
  func.func @transform_7(%arg0: i32) -> (i32, i32) {
    %c0_i32 = arith.constant 0 : i32
    %c0_i32_0 = arith.constant 0 : i32
    %c0_i32_1 = arith.constant 0 : i32
    return %c0_i32, %c0_i32_0 : i32, i32
  }
  func.func @transform_8(%arg0: i32) -> (i32, i32) {
    %c0_i32 = arith.constant 0 : i32
    %c0_i32_0 = arith.constant 0 : i32
    %c0_i32_1 = arith.constant 0 : i32
    return %c0_i32, %c0_i32_0 : i32, i32
  }
  func.func @transform_9(%arg0: i32) -> (i32, i32) {
    %c0_i32 = arith.constant 0 : i32
    %c0_i32_0 = arith.constant 0 : i32
    %c0_i32_1 = arith.constant 0 : i32
    return %c0_i32, %c0_i32_0 : i32, i32
  }
  func.func @transform_10(%arg0: i32) -> (i32, i32) {
    %c0_i32 = arith.constant 0 : i32
    %c0_i32_0 = arith.constant 0 : i32
    %c0_i32_1 = arith.constant 0 : i32
    return %c0_i32, %c0_i32_0 : i32, i32
  }
  func.func @transform_11(%arg0: i32) -> (i32, i32) {
    %c0_i32 = arith.constant 0 : i32
    %c0_i32_0 = arith.constant 0 : i32
    %c0_i32_1 = arith.constant 0 : i32
    return %c0_i32, %c0_i32_0 : i32, i32
  }
  func.func @transform_12(%arg0: i32) -> (i32, i32) {
    %c0_i32 = arith.constant 0 : i32
    %c0_i32_0 = arith.constant 0 : i32
    %c0_i32_1 = arith.constant 0 : i32
    return %c0_i32, %c0_i32_0 : i32, i32
  }
  func.func @transform_13(%arg0: i32) -> (i32, i32) {
    %c0_i32 = arith.constant 0 : i32
    %c0_i32_0 = arith.constant 0 : i32
    %c0_i32_1 = arith.constant 0 : i32
    return %c0_i32, %c0_i32_0 : i32, i32
  }
  func.func @transform_14(%arg0: i32) -> (i32, i32) {
    %c0_i32 = arith.constant 0 : i32
    %c0_i32_0 = arith.constant 0 : i32
    %c0_i32_1 = arith.constant 0 : i32
    return %c0_i32, %c0_i32_0 : i32, i32
  }
  func.func @transform_15(%arg0: i32) -> (i32, i32) {
    %c0_i32 = arith.constant 0 : i32
    %c0_i32_0 = arith.constant 0 : i32
    %c0_i32_1 = arith.constant 0 : i32
    return %c0_i32, %c0_i32_0 : i32, i32
  }
  func.func @transform_16(%arg0: i32) -> (i32, i32) {
    %c0_i32 = arith.constant 0 : i32
    %c0_i32_0 = arith.constant 0 : i32
    %c0_i32_1 = arith.constant 0 : i32
    return %c0_i32, %c0_i32_0 : i32, i32
  }
  func.func @transform_17(%arg0: i32) -> (i32, i32) {
    %c0_i32 = arith.constant 0 : i32
    %c0_i32_0 = arith.constant 0 : i32
    %c0_i32_1 = arith.constant 0 : i32
    return %c0_i32, %c0_i32_0 : i32, i32
  }
  func.func @transform_18(%arg0: i32) -> (i32, i32) {
    %c0_i32 = arith.constant 0 : i32
    %c0_i32_0 = arith.constant 0 : i32
    return %arg0, %c0_i32 : i32, i32
  }
  func.func @transform_19(%arg0: i32) -> (i32, i32) {
    %c0_i32 = arith.constant 0 : i32
    %c0_i32_0 = arith.constant 0 : i32
    return %arg0, %c0_i32 : i32, i32
  }
}

</mosaic_0001>

<llo_original>
// kernel: tpu_custom_call.1
$region0: #{tpu_custom_call.1}
  #allocation0 [shape = 'u32[]', space=smem, size = 0x4, offset = 0x4, fixed_abs, tag = 'smem constant byte address 0x4 - core index']
  #allocation1 [shape = 'u32[72,128]{1,0:T(1,128)}', space=vmem, size = 0x9000, scoped, tag = 'internal scratch']
  %s0 = inlined_call_operand.vmem [shape: bf16[8,784], index: 0, kind: input, shape index: {}]
  %s1 = inlined_call_operand.vmem [shape: f32[8,16], index: 1, kind: input, shape index: {}]
  %s2 = inlined_call_operand.vmem [shape: bf16[784,128], index: 2, kind: input, shape index: {}]
  %s3 = inlined_call_operand.vmem [shape: f32[1,128], index: 3, kind: input, shape index: {}]
  %s4 = inlined_call_operand.vmem [shape: bf16[128,64], index: 4, kind: input, shape index: {}]
  %s5 = inlined_call_operand.vmem [shape: f32[1,64], index: 5, kind: input, shape index: {}]
  %s6 = inlined_call_operand.vmem [shape: bf16[64,32], index: 6, kind: input, shape index: {}]
  %s7 = inlined_call_operand.vmem [shape: f32[1,32], index: 7, kind: input, shape index: {}]
  %s8 = inlined_call_operand.vmem [shape: bf16[32,32], index: 8, kind: input, shape index: {}]
  %s9 = inlined_call_operand.vmem [shape: f32[1,32], index: 9, kind: input, shape index: {}]
  %s10 = inlined_call_operand.vmem [shape: bf16[16,32], index: 10, kind: input, shape index: {}]
  %s11 = inlined_call_operand.vmem [shape: f32[1,32], index: 11, kind: input, shape index: {}]
  %s12 = inlined_call_operand.vmem [shape: bf16[32,64], index: 12, kind: input, shape index: {}]
  %s13 = inlined_call_operand.vmem [shape: f32[1,64], index: 13, kind: input, shape index: {}]
  %s14 = inlined_call_operand.vmem [shape: bf16[64,128], index: 14, kind: input, shape index: {}]
  %s15 = inlined_call_operand.vmem [shape: f32[1,128], index: 15, kind: input, shape index: {}]
  %s16 = inlined_call_operand.vmem [shape: bf16[128,784], index: 16, kind: input, shape index: {}]
  %s17 = inlined_call_operand.vmem [shape: f32[1,784], index: 17, kind: input, shape index: {}]
  %s18 = inlined_call_operand.hbm [shape: f32[8,32], index: 18, kind: output, shape index: {0}]
  %s19 = inlined_call_operand.hbm [shape: bf16[8,784], index: 19, kind: output, shape index: {1}]
  %20 = xla_tuple %s18, %s19
  %s21 = sld [smem:[#allocation0]]
  $region90: #{tpu_custom_call.1} parent=0
    _
  %s23 = ssub.s32 1, %s21
  %s24 = scalar_select 0, %s23, %s21
  $region1: #{tpu_custom_call.1} parent=0
    #allocation2 [shape = 'u8[4096]{0}', space=vmem, size = 0x1000, scoped, tag = 'output window, operand 0, single buffered']
    #allocation3 [shape = 's32[1]{0}', space=sflag, size = 0x4, scoped, tag = 'scoped memory for tpu_custom_call.1']
    #allocation4 [shape = 'u8[14336]{0}', space=vmem, size = 0x3800, scoped, tag = 'output window, operand 1, single buffered']
    #allocation5 [shape = 's32[1]{0}', space=sflag, size = 0x4, scoped, tag = 'scoped memory for tpu_custom_call.1']
    %25 = vsyncpa [#allocation3], 0
    %26 = vsyncpa [#allocation5], 0
    // Predicated region
    $region2: #{tpu_custom_call.1} parent=1 // pred_check
      _
    $region3: #{tpu_custom_call.1} parent=1 // pred_check_branch
      %28 = sbr.rel (0) target = $region5
    $region4: #{tpu_custom_call.1} parent=1 // pred_region
      _
    $region5: #{tpu_custom_call.1} parent=1 // pred_fallthru
      _
    // Predicated region
    $region6: #{tpu_custom_call.1} parent=1 // pred_check
      _
    $region7: #{tpu_custom_call.1} parent=1 // pred_check_branch
      %30 = sbr.rel (0) target = $region9
    $region8: #{tpu_custom_call.1} parent=1 // pred_region
      _
    $region9: #{tpu_custom_call.1} parent=1 // pred_fallthru
      _
    // Predicated region
    $region10: #{tpu_custom_call.1} parent=1 // pred_check
      _
    $region11: #{tpu_custom_call.1} parent=1 // pred_check_branch
      %32 = sbr.rel (0) target = $region13
    $region12: #{tpu_custom_call.1} parent=1 // pred_region
      _
    $region13: #{tpu_custom_call.1} parent=1 // pred_fallthru
      _
    // Predicated region
    $region14: #{tpu_custom_call.1} parent=1 // pred_check
      _
    $region15: #{tpu_custom_call.1} parent=1 // pred_check_branch
      %34 = sbr.rel (0) target = $region17
    $region16: #{tpu_custom_call.1} parent=1 // pred_region
      _
    $region17: #{tpu_custom_call.1} parent=1 // pred_fallthru
      _
    // Predicated region
    $region18: #{tpu_custom_call.1} parent=1 // pred_check
      _
    $region19: #{tpu_custom_call.1} parent=1 // pred_check_branch
      %36 = sbr.rel (0) target = $region21
    $region20: #{tpu_custom_call.1} parent=1 // pred_region
      _
    $region21: #{tpu_custom_call.1} parent=1 // pred_fallthru
      _
    // Predicated region
    $region22: #{tpu_custom_call.1} parent=1 // pred_check
      _
    $region23: #{tpu_custom_call.1} parent=1 // pred_check_branch
      %38 = sbr.rel (0) target = $region25
    $region24: #{tpu_custom_call.1} parent=1 // pred_region
      _
    $region25: #{tpu_custom_call.1} parent=1 // pred_fallthru
      _
    // Predicated region
    $region26: #{tpu_custom_call.1} parent=1 // pred_check
      _
    $region27: #{tpu_custom_call.1} parent=1 // pred_check_branch
      %40 = sbr.rel (0) target = $region29
    $region28: #{tpu_custom_call.1} parent=1 // pred_region
      _
    $region29: #{tpu_custom_call.1} parent=1 // pred_fallthru
      _
    // Predicated region
    $region30: #{tpu_custom_call.1} parent=1 // pred_check
      _
    $region31: #{tpu_custom_call.1} parent=1 // pred_check_branch
      %42 = sbr.rel (0) target = $region33
    $region32: #{tpu_custom_call.1} parent=1 // pred_region
      _
    $region33: #{tpu_custom_call.1} parent=1 // pred_fallthru
      _
    // Predicated region
    $region34: #{tpu_custom_call.1} parent=1 // pred_check
      _
    $region35: #{tpu_custom_call.1} parent=1 // pred_check_branch
      %44 = sbr.rel (0) target = $region37
    $region36: #{tpu_custom_call.1} parent=1 // pred_region
      _
    $region37: #{tpu_custom_call.1} parent=1 // pred_fallthru
      _
    // Predicated region
    $region38: #{tpu_custom_call.1} parent=1 // pred_check
      _
    $region39: #{tpu_custom_call.1} parent=1 // pred_check_branch
      %46 = sbr.rel (0) target = $region41
    $region40: #{tpu_custom_call.1} parent=1 // pred_region
      _
    $region41: #{tpu_custom_call.1} parent=1 // pred_fallthru
      _
    // Predicated region
    $region42: #{tpu_custom_call.1} parent=1 // pred_check
      _
    $region43: #{tpu_custom_call.1} parent=1 // pred_check_branch
      %48 = sbr.rel (0) target = $region45
    $region44: #{tpu_custom_call.1} parent=1 // pred_region
      _
    $region45: #{tpu_custom_call.1} parent=1 // pred_fallthru
      _
    // Predicated region
    $region46: #{tpu_custom_call.1} parent=1 // pred_check
      _
    $region47: #{tpu_custom_call.1} parent=1 // pred_check_branch
      %50 = sbr.rel (0) target = $region49
    $region48: #{tpu_custom_call.1} parent=1 // pred_region
      _
    $region49: #{tpu_custom_call.1} parent=1 // pred_fallthru
      _
    // Predicated region
    $region50: #{tpu_custom_call.1} parent=1 // pred_check
      _
    $region51: #{tpu_custom_call.1} parent=1 // pred_check_branch
      %52 = sbr.rel (0) target = $region53
    $region52: #{tpu_custom_call.1} parent=1 // pred_region
      _
    $region53: #{tpu_custom_call.1} parent=1 // pred_fallthru
      _
    // Predicated region
    $region54: #{tpu_custom_call.1} parent=1 // pred_check
      _
    $region55: #{tpu_custom_call.1} parent=1 // pred_check_branch
      %54 = sbr.rel (0) target = $region57
    $region56: #{tpu_custom_call.1} parent=1 // pred_region
      _
    $region57: #{tpu_custom_call.1} parent=1 // pred_fallthru
      _
    // Predicated region
    $region58: #{tpu_custom_call.1} parent=1 // pred_check
      _
    $region59: #{tpu_custom_call.1} parent=1 // pred_check_branch
      %56 = sbr.rel (0) target = $region61
    $region60: #{tpu_custom_call.1} parent=1 // pred_region
      _
    $region61: #{tpu_custom_call.1} parent=1 // pred_fallthru
      _
    // Predicated region
    $region62: #{tpu_custom_call.1} parent=1 // pred_check
      _
    $region63: #{tpu_custom_call.1} parent=1 // pred_check_branch
      %58 = sbr.rel (0) target = $region65
    $region64: #{tpu_custom_call.1} parent=1 // pred_region
      _
    $region65: #{tpu_custom_call.1} parent=1 // pred_fallthru
      _
    // Predicated region
    $region66: #{tpu_custom_call.1} parent=1 // pred_check
      _
    $region67: #{tpu_custom_call.1} parent=1 // pred_check_branch
      %60 = sbr.rel (0) target = $region69
    $region68: #{tpu_custom_call.1} parent=1 // pred_region
      _
    $region69: #{tpu_custom_call.1} parent=1 // pred_fallthru
      _
    // Predicated region
    $region70: #{tpu_custom_call.1} parent=1 // pred_check
      _
    $region71: #{tpu_custom_call.1} parent=1 // pred_check_branch
      %62 = sbr.rel (0) target = $region73
    $region72: #{tpu_custom_call.1} parent=1 // pred_region
      _
    $region73: #{tpu_custom_call.1} parent=1 // pred_fallthru
      _
    %v64 = vld [vmem:[%s0] sm:$0xff]
    %v65 = vld [vmem:[%s0 + $0x8] sm:$0xff]
    %v66 = vld [vmem:[%s0 + $0x10] sm:$0xff]
    %v67 = vld [vmem:[%s0 + $0x18] sm:$0xf]
    %v68 = vld [vmem:[%s2] sm:$0xf]
    %v69 = vld [vmem:[%s2 + $0x4] sm:$0xf]
    %v70 = vld [vmem:[%s2 + $0x8] sm:$0xf]
    %v71 = vld [vmem:[%s2 + $0xc] sm:$0xf]
    %v72 = vld [vmem:[%s2 + $0x10] sm:$0xf]
    %v73 = vld [vmem:[%s2 + $0x14] sm:$0xf]
    %v74 = vld [vmem:[%s2 + $0x18] sm:$0xf]
    %v75 = vld [vmem:[%s2 + $0x1c] sm:$0xf]
    %v76 = vld [vmem:[%s2 + $0x20] sm:$0xf]
    %v77 = vld [vmem:[%s2 + $0x24] sm:$0xf]
    %v78 = vld [vmem:[%s2 + $0x28] sm:$0xf]
    %v79 = vld [vmem:[%s2 + $0x2c] sm:$0xf]
    %v80 = vld [vmem:[%s2 + $0x30] sm:$0xf]
    %v81 = vld [vmem:[%s2 + $0x34] sm:$0xf]
    %v82 = vld [vmem:[%s2 + $0x38] sm:$0xf]
    %v83 = vld [vmem:[%s2 + $0x3c] sm:$0xf]
    %v84 = vld [vmem:[%s2 + $0x40] sm:$0xf]
    %v85 = vld [vmem:[%s2 + $0x44] sm:$0xf]
    %v86 = vld [vmem:[%s2 + $0x48] sm:$0xf]
    %v87 = vld [vmem:[%s2 + $0x4c] sm:$0xf]
    %v88 = vld [vmem:[%s2 + $0x50] sm:$0xf]
    %v89 = vld [vmem:[%s2 + $0x54] sm:$0xf]
    %v90 = vld [vmem:[%s2 + $0x58] sm:$0xf]
    %v91 = vld [vmem:[%s2 + $0x5c] sm:$0xf]
    %v92 = vld [vmem:[%s2 + $0x60] sm:$0xf]
    %v93 = vld [vmem:[%s2 + $0x64] sm:$0xf]
    %v94 = vld [vmem:[%s2 + $0x68] sm:$0xf]
    %v95 = vld [vmem:[%s2 + $0x6c] sm:$0xf]
    %v96 = vld [vmem:[%s2 + $0x70] sm:$0xf]
    %v97 = vld [vmem:[%s2 + $0x74] sm:$0xf]
    %v98 = vld [vmem:[%s2 + $0x78] sm:$0xf]
    %v99 = vld [vmem:[%s2 + $0x7c] sm:$0xf]
    %v100 = vld [vmem:[%s2 + $0x80] sm:$0xf]
    %v101 = vld [vmem:[%s2 + $0x84] sm:$0xf]
    %v102 = vld [vmem:[%s2 + $0x88] sm:$0xf]
    %v103 = vld [vmem:[%s2 + $0x8c] sm:$0xf]
    %v104 = vld [vmem:[%s2 + $0x90] sm:$0xf]
    %v105 = vld [vmem:[%s2 + $0x94] sm:$0xf]
    %v106 = vld [vmem:[%s2 + $0x98] sm:$0xf]
    %v107 = vld [vmem:[%s2 + $0x9c] sm:$0xf]
    %v108 = vld [vmem:[%s2 + $0xa0] sm:$0xf]
    %v109 = vld [vmem:[%s2 + $0xa4] sm:$0xf]
    %v110 = vld [vmem:[%s2 + $0xa8] sm:$0xf]
    %v111 = vld [vmem:[%s2 + $0xac] sm:$0xf]
    %v112 = vld [vmem:[%s2 + $0xb0] sm:$0xf]
    %v113 = vld [vmem:[%s2 + $0xb4] sm:$0xf]
    %v114 = vld [vmem:[%s2 + $0xb8] sm:$0xf]
    %v115 = vld [vmem:[%s2 + $0xbc] sm:$0xf]
    %v116 = vld [vmem:[%s2 + $0xc0] sm:$0xf]
    %v117 = vld [vmem:[%s2 + $0xc4] sm:$0xf]
    %v118 = vld [vmem:[%s2 + $0xc8] sm:$0xf]
    %v119 = vld [vmem:[%s2 + $0xcc] sm:$0xf]
    %v120 = vld [vmem:[%s2 + $0xd0] sm:$0xf]
    %v121 = vld [vmem:[%s2 + $0xd4] sm:$0xf]
    %v122 = vld [vmem:[%s2 + $0xd8] sm:$0xf]
    %v123 = vld [vmem:[%s2 + $0xdc] sm:$0xf]
    %v124 = vld [vmem:[%s2 + $0xe0] sm:$0xf]
    %v125 = vld [vmem:[%s2 + $0xe4] sm:$0xf]
    %v126 = vld [vmem:[%s2 + $0xe8] sm:$0xf]
    %v127 = vld [vmem:[%s2 + $0xec] sm:$0xf]
    %v128 = vld [vmem:[%s2 + $0xf0] sm:$0xf]
    %v129 = vld [vmem:[%s2 + $0xf4] sm:$0xf]
    %v130 = vld [vmem:[%s2 + $0xf8] sm:$0xf]
    %v131 = vld [vmem:[%s2 + $0xfc] sm:$0xf]
    %v132 = vld [vmem:[%s2 + $0x100] sm:$0xf]
    %v133 = vld [vmem:[%s2 + $0x104] sm:$0xf]
    %v134 = vld [vmem:[%s2 + $0x108] sm:$0xf]
    %v135 = vld [vmem:[%s2 + $0x10c] sm:$0xf]
    %v136 = vld [vmem:[%s2 + $0x110] sm:$0xf]
    %v137 = vld [vmem:[%s2 + $0x114] sm:$0xf]
    %v138 = vld [vmem:[%s2 + $0x118] sm:$0xf]
    %v139 = vld [vmem:[%s2 + $0x11c] sm:$0xf]
    %v140 = vld [vmem:[%s2 + $0x120] sm:$0xf]
    %v141 = vld [vmem:[%s2 + $0x124] sm:$0xf]
    %v142 = vld [vmem:[%s2 + $0x128] sm:$0xf]
    %v143 = vld [vmem:[%s2 + $0x12c] sm:$0xf]
    %v144 = vld [vmem:[%s2 + $0x130] sm:$0xf]
    %v145 = vld [vmem:[%s2 + $0x134] sm:$0xf]
    %v146 = vld [vmem:[%s2 + $0x138] sm:$0xf]
    %v147 = vld [vmem:[%s2 + $0x13c] sm:$0xf]
    %v148 = vld [vmem:[%s2 + $0x140] sm:$0xf]
    %v149 = vld [vmem:[%s2 + $0x144] sm:$0xf]
    %v150 = vld [vmem:[%s2 + $0x148] sm:$0xf]
    %v151 = vld [vmem:[%s2 + $0x14c] sm:$0xf]
    %v152 = vld [vmem:[%s2 + $0x150] sm:$0xf]
    %v153 = vld [vmem:[%s2 + $0x154] sm:$0xf]
    %v154 = vld [vmem:[%s2 + $0x158] sm:$0xf]
    %v155 = vld [vmem:[%s2 + $0x15c] sm:$0xf]
    %v156 = vld [vmem:[%s2 + $0x160] sm:$0xf]
    %v157 = vld [vmem:[%s2 + $0x164] sm:$0xf]
    %v158 = vld [vmem:[%s2 + $0x168] sm:$0xf]
    %v159 = vld [vmem:[%s2 + $0x16c] sm:$0xf]
    %v160 = vld [vmem:[%s2 + $0x170] sm:$0xf]
    %v161 = vld [vmem:[%s2 + $0x174] sm:$0xf]
    %v162 = vld [vmem:[%s2 + $0x178] sm:$0xf]
    %v163 = vld [vmem:[%s2 + $0x17c] sm:$0xf]
    %v164 = vld [vmem:[%s2 + $0x180] sm:$0xf]
    %v165 = vld [vmem:[%s2 + $0x184] sm:$0xf]
    %v166 = vld [vmem:[%s3] sm:$0x1]
    %v168 = vperm.slane %v166, 0
    %v174 = vunpack.c.l.b16 %v64
    %v175 = vunpack.c.h.b16 %v64
    %v176 = vunpack.c.l.b16 %v65
    %v177 = vunpack.c.h.b16 %v65
    %v178 = vunpack.c.l.b16 %v66
    %v179 = vunpack.c.h.b16 %v66
    %v180 = vunpack.c.l.b16 %v67
    %v181 = vpack.c.b16 %v174, %v174
    %v182 = vpack.c.b16 %v175, %v175
    %v183 = vpack.c.b16 %v176, %v176
    %v184 = vpack.c.b16 %v177, %v177
    %v185 = vpack.c.b16 %v178, %v178
    %v186 = vpack.c.b16 %v179, %v179
    %v187 = vpack.c.b16 %v180, %v180
    %v292 = vunpack.c.l.b16 %v68
    %v293 = vunpack.c.l.b16 %v69
    %v294 = vunpack.c.l.b16 %v70
    %v295 = vunpack.c.l.b16 %v71
    %v296 = vunpack.c.l.b16 %v72
    %v297 = vunpack.c.l.b16 %v73
    %v298 = vunpack.c.l.b16 %v74
    %v299 = vunpack.c.l.b16 %v75
    %v300 = vunpack.c.l.b16 %v76
    %v301 = vunpack.c.l.b16 %v77
    %v302 = vunpack.c.l.b16 %v78
    %v303 = vunpack.c.l.b16 %v79
    %v304 = vunpack.c.l.b16 %v80
    %v305 = vunpack.c.l.b16 %v81
    %v306 = vunpack.c.l.b16 %v82
    %v307 = vunpack.c.l.b16 %v83
    %v308 = vunpack.c.l.b16 %v84
    %v309 = vunpack.c.l.b16 %v85
    %v310 = vunpack.c.l.b16 %v86
    %v311 = vunpack.c.l.b16 %v87
    %v312 = vunpack.c.l.b16 %v88
    %v313 = vunpack.c.l.b16 %v89
    %v314 = vunpack.c.l.b16 %v90
    %v315 = vunpack.c.l.b16 %v91
    %v316 = vunpack.c.l.b16 %v92
    %v317 = vunpack.c.l.b16 %v93
    %v318 = vunpack.c.l.b16 %v94
    %v319 = vunpack.c.l.b16 %v95
    %v320 = vunpack.c.l.b16 %v96
    %v321 = vunpack.c.l.b16 %v97
    %v322 = vunpack.c.l.b16 %v98
    %v323 = vunpack.c.l.b16 %v99
    %v324 = vunpack.c.l.b16 %v100
    %v325 = vunpack.c.l.b16 %v101
    %v326 = vunpack.c.l.b16 %v102
    %v327 = vunpack.c.l.b16 %v103
    %v328 = vunpack.c.l.b16 %v104
    %v329 = vunpack.c.l.b16 %v105
    %v330 = vunpack.c.l.b16 %v106
    %v331 = vunpack.c.l.b16 %v107
    %v332 = vunpack.c.l.b16 %v108
    %v333 = vunpack.c.l.b16 %v109
    %v334 = vunpack.c.l.b16 %v110
    %v335 = vunpack.c.l.b16 %v111
    %v336 = vunpack.c.l.b16 %v112
    %v337 = vunpack.c.l.b16 %v113
    %v338 = vunpack.c.l.b16 %v114
    %v339 = vunpack.c.l.b16 %v115
    %v340 = vunpack.c.l.b16 %v116
    %v341 = vunpack.c.l.b16 %v117
    %v342 = vunpack.c.l.b16 %v118
    %v343 = vunpack.c.l.b16 %v119
    %v344 = vunpack.c.l.b16 %v120
    %v345 = vunpack.c.l.b16 %v121
    %v346 = vunpack.c.l.b16 %v122
    %v347 = vunpack.c.l.b16 %v123
    %v348 = vunpack.c.l.b16 %v124
    %v349 = vunpack.c.l.b16 %v125
    %v350 = vunpack.c.l.b16 %v126
    %v351 = vunpack.c.l.b16 %v127
    %v352 = vunpack.c.l.b16 %v128
    %v353 = vunpack.c.l.b16 %v129
    %v354 = vunpack.c.l.b16 %v130
    %v355 = vunpack.c.l.b16 %v131
    %v356 = vunpack.c.l.b16 %v132
    %v357 = vunpack.c.l.b16 %v133
    %v358 = vunpack.c.l.b16 %v134
    %v359 = vunpack.c.l.b16 %v135
    %v360 = vunpack.c.l.b16 %v136
    %v361 = vunpack.c.l.b16 %v137
    %v362 = vunpack.c.l.b16 %v138
    %v363 = vunpack.c.l.b16 %v139
    %v364 = vunpack.c.l.b16 %v140
    %v365 = vunpack.c.l.b16 %v141
    %v366 = vunpack.c.l.b16 %v142
    %v367 = vunpack.c.l.b16 %v143
    %v368 = vunpack.c.l.b16 %v144
    %v369 = vunpack.c.l.b16 %v145
    %v370 = vunpack.c.l.b16 %v146
    %v371 = vunpack.c.l.b16 %v147
    %v372 = vunpack.c.l.b16 %v148
    %v373 = vunpack.c.l.b16 %v149
    %v374 = vunpack.c.l.b16 %v150
    %v375 = vunpack.c.l.b16 %v151
    %v376 = vunpack.c.l.b16 %v152
    %v377 = vunpack.c.l.b16 %v153
    %v378 = vunpack.c.l.b16 %v154
    %v379 = vunpack.c.l.b16 %v155
    %v380 = vunpack.c.l.b16 %v156
    %v381 = vunpack.c.l.b16 %v157
    %v382 = vunpack.c.l.b16 %v158
    %v383 = vunpack.c.l.b16 %v159
    %v384 = vunpack.c.l.b16 %v160
    %v385 = vunpack.c.l.b16 %v161
    %v386 = vunpack.c.l.b16 %v162
    %v387 = vunpack.c.l.b16 %v163
    %v388 = vunpack.c.l.b16 %v164
    %v389 = vunpack.c.l.b16 %v165
    %v390 = vpack.c.b16 %v293, %v292
    %v391 = vpack.c.b16 %v295, %v294
    %v392 = vpack.c.b16 %v297, %v296
    %v393 = vpack.c.b16 %v299, %v298
    %v394 = vpack.c.b16 %v301, %v300
    %v395 = vpack.c.b16 %v303, %v302
    %v396 = vpack.c.b16 %v305, %v304
    %v397 = vpack.c.b16 %v307, %v306
    %v398 = vpack.c.b16 %v309, %v308
    %v399 = vpack.c.b16 %v311, %v310
    %v400 = vpack.c.b16 %v313, %v312
    %v401 = vpack.c.b16 %v315, %v314
    %v402 = vpack.c.b16 %v317, %v316
    %v403 = vpack.c.b16 %v319, %v318
    %v404 = vpack.c.b16 %v321, %v320
    %v405 = vpack.c.b16 %v323, %v322
    %v406 = vpack.c.b16 %v325, %v324
    %v407 = vpack.c.b16 %v327, %v326
    %v408 = vpack.c.b16 %v329, %v328
    %v409 = vpack.c.b16 %v331, %v330
    %v410 = vpack.c.b16 %v333, %v332
    %v411 = vpack.c.b16 %v335, %v334
    %v412 = vpack.c.b16 %v337, %v336
    %v413 = vpack.c.b16 %v339, %v338
    %v414 = vpack.c.b16 %v341, %v340
    %v415 = vpack.c.b16 %v343, %v342
    %v416 = vpack.c.b16 %v345, %v344
    %v417 = vpack.c.b16 %v347, %v346
    %v418 = vpack.c.b16 %v349, %v348
    %v419 = vpack.c.b16 %v351, %v350
    %v420 = vpack.c.b16 %v353, %v352
    %v421 = vpack.c.b16 %v355, %v354
    %v422 = vpack.c.b16 %v357, %v356
    %v423 = vpack.c.b16 %v359, %v358
    %v424 = vpack.c.b16 %v361, %v360
    %v425 = vpack.c.b16 %v363, %v362
    %v426 = vpack.c.b16 %v365, %v364
    %v427 = vpack.c.b16 %v367, %v366
    %v428 = vpack.c.b16 %v369, %v368
    %v429 = vpack.c.b16 %v371, %v370
    %v430 = vpack.c.b16 %v373, %v372
    %v431 = vpack.c.b16 %v375, %v374
    %v432 = vpack.c.b16 %v377, %v376
    %v433 = vpack.c.b16 %v379, %v378
    %v434 = vpack.c.b16 %v381, %v380
    %v435 = vpack.c.b16 %v383, %v382
    %v436 = vpack.c.b16 %v385, %v384
    %v437 = vpack.c.b16 %v387, %v386
    %v438 = vpack.c.b16 %v389, %v388
    %vm488 = vcmask 130048
    %v490 = vsel %vm488, %v187, 0
    %492 = vmatpush.bf16.msra.mxu0 %v397
    %493 = vmatpush.bf16.msra.mxu0 %v396
    %494 = vmatpush.bf16.msra.mxu0 %v395
    %495 = vmatpush.bf16.msra.mxu0 %v394
    %496 = vmatpush.bf16.msra.mxu0 %v393
    %497 = vmatpush.bf16.msra.mxu0 %v392
    %498 = vmatpush.bf16.msra.mxu0 %v391
    %499 = vmatpush.bf16.msra.mxu0 %v390
    %500 = vmatmul.bf16.gmra.mxu0 %v181
    %v501 = vpop.f32.mrf.mxu0
    %v502 = vadd.f32 %v168, %v501
    %v503 = vpop.f32.mrf.mxu0
    %504 = vdwg.mxu0
    %505 = vmatpush.bf16.msra.mxu0 %v405
    %506 = vmatpush.bf16.msra.mxu0 %v404
    %507 = vmatpush.bf16.msra.mxu0 %v403
    %508 = vmatpush.bf16.msra.mxu0 %v402
    %509 = vmatpush.bf16.msra.mxu0 %v401
    %510 = vmatpush.bf16.msra.mxu0 %v400
    %511 = vmatpush.bf16.msra.mxu0 %v399
    %512 = vmatpush.bf16.msra.mxu0 %v398
    %513 = vmatmul.bf16.gmra.mxu0 %v182
    %v514 = vpop.f32.mrf.mxu0
    %v515 = vadd.f32 %v502, %v514
    %v516 = vpop.f32.mrf.mxu0
    %517 = vdwg.mxu0
    %518 = vmatpush.bf16.msra.mxu0 %v413
    %519 = vmatpush.bf16.msra.mxu0 %v412
    %520 = vmatpush.bf16.msra.mxu0 %v411
    %521 = vmatpush.bf16.msra.mxu0 %v410
    %522 = vmatpush.bf16.msra.mxu0 %v409
    %523 = vmatpush.bf16.msra.mxu0 %v408
    %524 = vmatpush.bf16.msra.mxu0 %v407
    %525 = vmatpush.bf16.msra.mxu0 %v406
    %526 = vmatmul.bf16.gmra.mxu0 %v183
    %v527 = vpop.f32.mrf.mxu0
    %v528 = vadd.f32 %v515, %v527
    %v529 = vpop.f32.mrf.mxu0
    %530 = vdwg.mxu0
    %531 = vmatpush.bf16.msra.mxu0 %v421
    %532 = vmatpush.bf16.msra.mxu0 %v420
    %533 = vmatpush.bf16.msra.mxu0 %v419
    %534 = vmatpush.bf16.msra.mxu0 %v418
    %535 = vmatpush.bf16.msra.mxu0 %v417
    %536 = vmatpush.bf16.msra.mxu0 %v416
    %537 = vmatpush.bf16.msra.mxu0 %v415
    %538 = vmatpush.bf16.msra.mxu0 %v414
    %539 = vmatmul.bf16.gmra.mxu0 %v184
    %v540 = vpop.f32.mrf.mxu0
    %v541 = vadd.f32 %v528, %v540
    %v542 = vpop.f32.mrf.mxu0
    %543 = vdwg.mxu0
    %544 = vmatpush.bf16.msra.mxu0 %v429
    %545 = vmatpush.bf16.msra.mxu0 %v428
    %546 = vmatpush.bf16.msra.mxu0 %v427
    %547 = vmatpush.bf16.msra.mxu0 %v426
    %548 = vmatpush.bf16.msra.mxu0 %v425
    %549 = vmatpush.bf16.msra.mxu0 %v424
    %550 = vmatpush.bf16.msra.mxu0 %v423
    %551 = vmatpush.bf16.msra.mxu0 %v422
    %552 = vmatmul.bf16.gmra.mxu0 %v185
    %v553 = vpop.f32.mrf.mxu0
    %v554 = vadd.f32 %v541, %v553
    %v555 = vpop.f32.mrf.mxu0
    %556 = vdwg.mxu0
    %557 = vmatpush.bf16.msra.mxu0 %v437
    %558 = vmatpush.bf16.msra.mxu0 %v436
    %559 = vmatpush.bf16.msra.mxu0 %v435
    %560 = vmatpush.bf16.msra.mxu0 %v434
    %561 = vmatpush.bf16.msra.mxu0 %v433
    %562 = vmatpush.bf16.msra.mxu0 %v432
    %563 = vmatpush.bf16.msra.mxu0 %v431
    %564 = vmatpush.bf16.msra.mxu0 %v430
    %565 = vmatmul.bf16.gmra.mxu0 %v186
    %v566 = vpop.f32.mrf.mxu0
    %v567 = vadd.f32 %v554, %v566
    %v568 = vpop.f32.mrf.mxu0
    %569 = vdwg.mxu0
    %570 = vmatpush.bf16.msra.mxu0 0
    %571 = vmatpush.bf16.msra.mxu0 0
    %572 = vmatpush.bf16.msra.mxu0 0
    %573 = vmatpush.bf16.msra.mxu0 0
    %574 = vmatpush.bf16.msra.mxu0 0
    %575 = vmatpush.bf16.msra.mxu0 0
    %576 = vmatpush.bf16.msra.mxu0 0
    %577 = vmatpush.bf16.msra.mxu0 %v438
    %578 = vmatmul.bf16.gmra.mxu0 %v490
    %v579 = vpop.f32.mrf.mxu0
    %v580 = vadd.f32 %v567, %v579
    %v581 = vpop.f32.mrf.mxu0
    %582 = vdwg.mxu0
    %vm583 = vcmp.gt.f32.partialorder %v580, 0.0
    %v584 = vmul.f32 %v580, 0.2
    %v585 = vsel %vm583, %v580, %v584
    %v586 = vld [vmem:[%s4] sm:$0xf]
    %v587 = vld [vmem:[%s4 + $0x4] sm:$0xf]
    %v588 = vld [vmem:[%s4 + $0x8] sm:$0xf]
    %v589 = vld [vmem:[%s4 + $0xc] sm:$0xf]
    %v590 = vld [vmem:[%s4 + $0x10] sm:$0xf]
    %v591 = vld [vmem:[%s4 + $0x14] sm:$0xf]
    %v592 = vld [vmem:[%s4 + $0x18] sm:$0xf]
    %v593 = vld [vmem:[%s4 + $0x1c] sm:$0xf]
    %v594 = vld [vmem:[%s4 + $0x20] sm:$0xf]
    %v595 = vld [vmem:[%s4 + $0x24] sm:$0xf]
    %v596 = vld [vmem:[%s4 + $0x28] sm:$0xf]
    %v597 = vld [vmem:[%s4 + $0x2c] sm:$0xf]
    %v598 = vld [vmem:[%s4 + $0x30] sm:$0xf]
    %v599 = vld [vmem:[%s4 + $0x34] sm:$0xf]
    %v600 = vld [vmem:[%s4 + $0x38] sm:$0xf]
    %v601 = vld [vmem:[%s4 + $0x3c] sm:$0xf]
    %v602 = vld [vmem:[%s5] sm:$0x1]
    %v603 = vpack.c.bf16 %v585, %v585
    %v605 = vperm.slane %v602, 0
    %v623 = vunpack.c.l.b16 %v586
    %v624 = vunpack.c.l.b16 %v587
    %v625 = vunpack.c.l.b16 %v588
    %v626 = vunpack.c.l.b16 %v589
    %v627 = vunpack.c.l.b16 %v590
    %v628 = vunpack.c.l.b16 %v591
    %v629 = vunpack.c.l.b16 %v592
    %v630 = vunpack.c.l.b16 %v593
    %v631 = vunpack.c.l.b16 %v594
    %v632 = vunpack.c.l.b16 %v595
    %v633 = vunpack.c.l.b16 %v596
    %v634 = vunpack.c.l.b16 %v597
    %v635 = vunpack.c.l.b16 %v598
    %v636 = vunpack.c.l.b16 %v599
    %v637 = vunpack.c.l.b16 %v600
    %v638 = vunpack.c.l.b16 %v601
    %v639 = vpack.c.b16 %v624, %v623
    %v640 = vpack.c.b16 %v626, %v625
    %v641 = vpack.c.b16 %v628, %v627
    %v642 = vpack.c.b16 %v630, %v629
    %v643 = vpack.c.b16 %v632, %v631
    %v644 = vpack.c.b16 %v634, %v633
    %v645 = vpack.c.b16 %v636, %v635
    %v646 = vpack.c.b16 %v638, %v637
    %655 = vmatpush.bf16.msra.mxu0 %v646
    %656 = vmatpush.bf16.msra.mxu0 %v645
    %657 = vmatpush.bf16.msra.mxu0 %v644
    %658 = vmatpush.bf16.msra.mxu0 %v643
    %659 = vmatpush.bf16.msra.mxu0 %v642
    %660 = vmatpush.bf16.msra.mxu0 %v641
    %661 = vmatpush.bf16.msra.mxu0 %v640
    %662 = vmatpush.bf16.msra.mxu0 %v639
    %663 = vmatmul.bf16.gmra.mxu0 %v603
    %v664 = vpop.f32.mrf.mxu0
    %v665 = vadd.f32 %v605, %v664
    %v666 = vpop.f32.mrf.mxu0
    %667 = vdwg.mxu0
    %vm668 = vcmp.gt.f32.partialorder %v665, 0.0
    %v669 = vmul.f32 %v665, 0.2
    %v670 = vsel %vm668, %v665, %v669
    %v671 = vld [vmem:[%s6] sm:$0xf]
    %v672 = vld [vmem:[%s6 + $0x4] sm:$0xf]
    %v673 = vld [vmem:[%s6 + $0x8] sm:$0xf]
    %v674 = vld [vmem:[%s6 + $0xc] sm:$0xf]
    %v675 = vld [vmem:[%s6 + $0x10] sm:$0xf]
    %v676 = vld [vmem:[%s6 + $0x14] sm:$0xf]
    %v677 = vld [vmem:[%s6 + $0x18] sm:$0xf]
    %v678 = vld [vmem:[%s6 + $0x1c] sm:$0xf]
    %v679 = vld [vmem:[%s7] sm:$0x1]
    %v680 = vpack.c.bf16 %v670, %v670
    %v682 = vperm.slane %v679, 0
    %v692 = vunpack.c.l.b16 %v671
    %v693 = vunpack.c.l.b16 %v672
    %v694 = vunpack.c.l.b16 %v673
    %v695 = vunpack.c.l.b16 %v674
    %v696 = vunpack.c.l.b16 %v675
    %v697 = vunpack.c.l.b16 %v676
    %v698 = vunpack.c.l.b16 %v677
    %v699 = vunpack.c.l.b16 %v678
    %v700 = vpack.c.b16 %v693, %v692
    %v701 = vpack.c.b16 %v695, %v694
    %v702 = vpack.c.b16 %v697, %v696
    %v703 = vpack.c.b16 %v699, %v698
    %vm708 = vcmask 523264
    %v710 = vsel %vm708, %v680, 0
    %712 = vmatpush.bf16.msra.mxu0 0
    %713 = vmatpush.bf16.msra.mxu0 0
    %714 = vmatpush.bf16.msra.mxu0 0
    %715 = vmatpush.bf16.msra.mxu0 0
    %716 = vmatpush.bf16.msra.mxu0 %v703
    %717 = vmatpush.bf16.msra.mxu0 %v702
    %718 = vmatpush.bf16.msra.mxu0 %v701
    %719 = vmatpush.bf16.msra.mxu0 %v700
    %720 = vmatmul.bf16.gmra.mxu0 %v710
    %v721 = vpop.f32.mrf.mxu0
    %v722 = vadd.f32 %v682, %v721
    %v723 = vpop.f32.mrf.mxu0
    %724 = vdwg.mxu0
    %vm725 = vcmp.gt.f32.partialorder %v722, 0.0
    %v726 = vmul.f32 %v722, 0.2
    %v727 = vsel %vm725, %v722, %v726
    %v728 = vld [vmem:[%s8] sm:$0xf]
    %v729 = vld [vmem:[%s8 + $0x4] sm:$0xf]
    %v730 = vld [vmem:[%s8 + $0x8] sm:$0xf]
    %v731 = vld [vmem:[%s8 + $0xc] sm:$0xf]
    %v732 = vld [vmem:[%s9] sm:$0x1]
    %v733 = vpack.c.bf16 %v727, %v727
    %v735 = vperm.slane %v732, 0
    %v741 = vunpack.c.l.b16 %v728
    %v742 = vunpack.c.l.b16 %v729
    %v743 = vunpack.c.l.b16 %v730
    %v744 = vunpack.c.l.b16 %v731
    %v745 = vpack.c.b16 %v742, %v741
    %v746 = vpack.c.b16 %v744, %v743
    %vm749 = vcmask 261120
    %v751 = vsel %vm749, %v733, 0
    %753 = vmatpush.bf16.msra.mxu0 0
    %754 = vmatpush.bf16.msra.mxu0 0
    %755 = vmatpush.bf16.msra.mxu0 0
    %756 = vmatpush.bf16.msra.mxu0 0
    %757 = vmatpush.bf16.msra.mxu0 0
    %758 = vmatpush.bf16.msra.mxu0 0
    %759 = vmatpush.bf16.msra.mxu0 %v746
    %760 = vmatpush.bf16.msra.mxu0 %v745
    %761 = vmatmul.bf16.gmra.mxu0 %v751
    %v762 = vpop.f32.mrf.mxu0
    %v763 = vadd.f32 %v735, %v762
    %v764 = vpop.f32.mrf.mxu0
    %765 = vdwg.mxu0
    %766 = vst.msk [vmem:[#allocation2] sm:$0xff] %vm749, %v763
    %v767 = vmul.f32 %v763, 0.5
    %v768 = vmul.f32 %v767, 1.442695
    %v769 = vpow.pop %v768
    %v770 = vld [vmem:[%s1] sm:$0xff]
    %772 = vrot.lane.b32.xlu0 %v770, 16
    %v773 = vpop.permute.xlu0 %772
    %v775 = vmul.f32 %v769, %v773
    %777 = vrot.lane.b32.xlu0 %v775, 112
    %v778 = vpop.permute.xlu0 %777
    %v780 = vadd.f32 %v763, %v778
    %v781 = vld [vmem:[%s10] sm:$0xf]
    %v782 = vld [vmem:[%s10 + $0x4] sm:$0xf]
    %v783 = vld [vmem:[%s11] sm:$0x1]
    %v784 = vpack.c.bf16 %v780, %v780
    %v786 = vperm.slane %v783, 0
    %v790 = vunpack.c.l.b16 %v781
    %v791 = vunpack.c.l.b16 %v782
    %v792 = vpack.c.b16 %v791, %v790
    %v795 = vsel %vm488, %v784, 0
    %797 = vmatpush.bf16.msra.mxu0 0
    %798 = vmatpush.bf16.msra.mxu0 0
    %799 = vmatpush.bf16.msra.mxu0 0
    %800 = vmatpush.bf16.msra.mxu0 0
    %801 = vmatpush.bf16.msra.mxu0 0
    %802 = vmatpush.bf16.msra.mxu0 0
    %803 = vmatpush.bf16.msra.mxu0 0
    %804 = vmatpush.bf16.msra.mxu0 %v792
    %805 = vmatmul.bf16.gmra.mxu0 %v795
    %v806 = vpop.f32.mrf.mxu0
    %v807 = vadd.f32 %v786, %v806
    %v808 = vpop.f32.mrf.mxu0
    %809 = vdwg.mxu0
    %v810 = vmax.f32 %v807, 0.0
    %v811 = vld [vmem:[%s12] sm:$0xf]
    %v812 = vld [vmem:[%s12 + $0x4] sm:$0xf]
    %v813 = vld [vmem:[%s12 + $0x8] sm:$0xf]
    %v814 = vld [vmem:[%s12 + $0xc] sm:$0xf]
    %v815 = vld [vmem:[%s13] sm:$0x1]
    %v816 = vpack.c.bf16 %v810, %v810
    %v818 = vperm.slane %v815, 0
    %v824 = vunpack.c.l.b16 %v811
    %v825 = vunpack.c.l.b16 %v812
    %v826 = vunpack.c.l.b16 %v813
    %v827 = vunpack.c.l.b16 %v814
    %v828 = vpack.c.b16 %v825, %v824
    %v829 = vpack.c.b16 %v827, %v826
    %v833 = vsel %vm749, %v816, 0
    %835 = vmatpush.bf16.msra.mxu0 0
    %836 = vmatpush.bf16.msra.mxu0 0
    %837 = vmatpush.bf16.msra.mxu0 0
    %838 = vmatpush.bf16.msra.mxu0 0
    %839 = vmatpush.bf16.msra.mxu0 0
    %840 = vmatpush.bf16.msra.mxu0 0
    %841 = vmatpush.bf16.msra.mxu0 %v829
    %842 = vmatpush.bf16.msra.mxu0 %v828
    %843 = vmatmul.bf16.gmra.mxu0 %v833
    %v844 = vpop.f32.mrf.mxu0
    %v845 = vadd.f32 %v818, %v844
    %v846 = vpop.f32.mrf.mxu0
    %847 = vdwg.mxu0
    %v848 = vmax.f32 %v845, 0.0
    %v849 = vld [vmem:[%s14] sm:$0xf]
    %v850 = vld [vmem:[%s14 + $0x4] sm:$0xf]
    %v851 = vld [vmem:[%s14 + $0x8] sm:$0xf]
    %v852 = vld [vmem:[%s14 + $0xc] sm:$0xf]
    %v853 = vld [vmem:[%s14 + $0x10] sm:$0xf]
    %v854 = vld [vmem:[%s14 + $0x14] sm:$0xf]
    %v855 = vld [vmem:[%s14 + $0x18] sm:$0xf]
    %v856 = vld [vmem:[%s14 + $0x1c] sm:$0xf]
    %v857 = vld [vmem:[%s15] sm:$0x1]
    %v858 = vpack.c.bf16 %v848, %v848
    %v860 = vperm.slane %v857, 0
    %v870 = vunpack.c.l.b16 %v849
    %v871 = vunpack.c.l.b16 %v850
    %v872 = vunpack.c.l.b16 %v851
    %v873 = vunpack.c.l.b16 %v852
    %v874 = vunpack.c.l.b16 %v853
    %v875 = vunpack.c.l.b16 %v854
    %v876 = vunpack.c.l.b16 %v855
    %v877 = vunpack.c.l.b16 %v856
    %v878 = vpack.c.b16 %v871, %v870
    %v879 = vpack.c.b16 %v873, %v872
    %v880 = vpack.c.b16 %v875, %v874
    %v881 = vpack.c.b16 %v877, %v876
    %v887 = vsel %vm708, %v858, 0
    %889 = vmatpush.bf16.msra.mxu0 0
    %890 = vmatpush.bf16.msra.mxu0 0
    %891 = vmatpush.bf16.msra.mxu0 0
    %892 = vmatpush.bf16.msra.mxu0 0
    %893 = vmatpush.bf16.msra.mxu0 %v881
    %894 = vmatpush.bf16.msra.mxu0 %v880
    %895 = vmatpush.bf16.msra.mxu0 %v879
    %896 = vmatpush.bf16.msra.mxu0 %v878
    %897 = vmatmul.bf16.gmra.mxu0 %v887
    %v898 = vpop.f32.mrf.mxu0
    %v899 = vadd.f32 %v860, %v898
    %v900 = vpop.f32.mrf.mxu0
    %901 = vdwg.mxu0
    %v902 = vmax.f32 %v899, 0.0
    %v903 = vld [vmem:[%s16] sm:$0xff]
    %v904 = vld [vmem:[%s16 + $0x8] sm:$0xff]
    %v905 = vld [vmem:[%s16 + $0x10] sm:$0xff]
    %v906 = vld [vmem:[%s16 + $0x18] sm:$0xf]
    %v907 = vld [vmem:[%s16 + $0x1c] sm:$0xff]
    %v908 = vld [vmem:[%s16 + $0x24] sm:$0xff]
    %v909 = vld [vmem:[%s16 + $0x2c] sm:$0xff]
    %v910 = vld [vmem:[%s16 + $0x34] sm:$0xf]
    %v911 = vld [vmem:[%s16 + $0x38] sm:$0xff]
    %v912 = vld [vmem:[%s16 + $0x40] sm:$0xff]
    %v913 = vld [vmem:[%s16 + $0x48] sm:$0xff]
    %v914 = vld [vmem:[%s16 + $0x50] sm:$0xf]
    %v915 = vld [vmem:[%s16 + $0x54] sm:$0xff]
    %v916 = vld [vmem:[%s16 + $0x5c] sm:$0xff]
    %v917 = vld [vmem:[%s16 + $0x64] sm:$0xff]
    %v918 = vld [vmem:[%s16 + $0x6c] sm:$0xf]
    %v919 = vld [vmem:[%s16 + $0x70] sm:$0xff]
    %v920 = vld [vmem:[%s16 + $0x78] sm:$0xff]
    %v921 = vld [vmem:[%s16 + $0x80] sm:$0xff]
    %v922 = vld [vmem:[%s16 + $0x88] sm:$0xf]
    %v923 = vld [vmem:[%s16 + $0x8c] sm:$0xff]
    %v924 = vld [vmem:[%s16 + $0x94] sm:$0xff]
    %v925 = vld [vmem:[%s16 + $0x9c] sm:$0xff]
    %v926 = vld [vmem:[%s16 + $0xa4] sm:$0xf]
    %v927 = vld [vmem:[%s16 + $0xa8] sm:$0xff]
    %v928 = vld [vmem:[%s16 + $0xb0] sm:$0xff]
    %v929 = vld [vmem:[%s16 + $0xb8] sm:$0xff]
    %v930 = vld [vmem:[%s16 + $0xc0] sm:$0xf]
    %v931 = vld [vmem:[%s16 + $0xc4] sm:$0xff]
    %v932 = vld [vmem:[%s16 + $0xcc] sm:$0xff]
    %v933 = vld [vmem:[%s16 + $0xd4] sm:$0xff]
    %v934 = vld [vmem:[%s16 + $0xdc] sm:$0xf]
    %v935 = vld [vmem:[%s16 + $0xe0] sm:$0xff]
    %v936 = vld [vmem:[%s16 + $0xe8] sm:$0xff]
    %v937 = vld [vmem:[%s16 + $0xf0] sm:$0xff]
    %v938 = vld [vmem:[%s16 + $0xf8] sm:$0xf]
    %v939 = vld [vmem:[%s16 + $0xfc] sm:$0xff]
    %v940 = vld [vmem:[%s16 + $0x104] sm:$0xff]
    %v941 = vld [vmem:[%s16 + $0x10c] sm:$0xff]
    %v942 = vld [vmem:[%s16 + $0x114] sm:$0xf]
    %v943 = vld [vmem:[%s16 + $0x118] sm:$0xff]
    %v944 = vld [vmem:[%s16 + $0x120] sm:$0xff]
    %v945 = vld [vmem:[%s16 + $0x128] sm:$0xff]
    %v946 = vld [vmem:[%s16 + $0x130] sm:$0xf]
    %v947 = vld [vmem:[%s16 + $0x134] sm:$0xff]
    %v948 = vld [vmem:[%s16 + $0x13c] sm:$0xff]
    %v949 = vld [vmem:[%s16 + $0x144] sm:$0xff]
    %v950 = vld [vmem:[%s16 + $0x14c] sm:$0xf]
    %v951 = vld [vmem:[%s16 + $0x150] sm:$0xff]
    %v952 = vld [vmem:[%s16 + $0x158] sm:$0xff]
    %v953 = vld [vmem:[%s16 + $0x160] sm:$0xff]
    %v954 = vld [vmem:[%s16 + $0x168] sm:$0xf]
    %v955 = vld [vmem:[%s16 + $0x16c] sm:$0xff]
    %v956 = vld [vmem:[%s16 + $0x174] sm:$0xff]
    %v957 = vld [vmem:[%s16 + $0x17c] sm:$0xff]
    %v958 = vld [vmem:[%s16 + $0x184] sm:$0xf]
    %v959 = vld [vmem:[%s16 + $0x188] sm:$0xff]
    %v960 = vld [vmem:[%s16 + $0x190] sm:$0xff]
    %v961 = vld [vmem:[%s16 + $0x198] sm:$0xff]
    %v962 = vld [vmem:[%s16 + $0x1a0] sm:$0xf]
    %v963 = vld [vmem:[%s16 + $0x1a4] sm:$0xff]
    %v964 = vld [vmem:[%s16 + $0x1ac] sm:$0xff]
    %v965 = vld [vmem:[%s16 + $0x1b4] sm:$0xff]
    %v966 = vld [vmem:[%s16 + $0x1bc] sm:$0xf]
    %v967 = vld [vmem:[%s17] sm:$0x7f]
    %v968 = vpack.c.bf16 %v902, %v902
    %v970 = vperm.slane %v967, 0
    %v971 = vperm.slane %v967, 1
    %v972 = vperm.slane %v967, 2
    %v973 = vperm.slane %v967, 3
    %v974 = vperm.slane %v967, 4
    %v975 = vperm.slane %v967, 5
    %v976 = vperm.slane %v967, 6
    %v1048 = vunpack.c.l.b16 %v903
    %v1049 = vunpack.c.h.b16 %v903
    %v1050 = vunpack.c.l.b16 %v904
    %v1051 = vunpack.c.h.b16 %v904
    %v1052 = vunpack.c.l.b16 %v905
    %v1053 = vunpack.c.h.b16 %v905
    %v1054 = vunpack.c.l.b16 %v906
    %v1055 = vunpack.c.l.b16 %v907
    %v1056 = vunpack.c.h.b16 %v907
    %v1057 = vunpack.c.l.b16 %v908
    %v1058 = vunpack.c.h.b16 %v908
    %v1059 = vunpack.c.l.b16 %v909
    %v1060 = vunpack.c.h.b16 %v909
    %v1061 = vunpack.c.l.b16 %v910
    %v1062 = vunpack.c.l.b16 %v911
    %v1063 = vunpack.c.h.b16 %v911
    %v1064 = vunpack.c.l.b16 %v912
    %v1065 = vunpack.c.h.b16 %v912
    %v1066 = vunpack.c.l.b16 %v913
    %v1067 = vunpack.c.h.b16 %v913
    %v1068 = vunpack.c.l.b16 %v914
    %v1069 = vunpack.c.l.b16 %v915
    %v1070 = vunpack.c.h.b16 %v915
    %v1071 = vunpack.c.l.b16 %v916
    %v1072 = vunpack.c.h.b16 %v916
    %v1073 = vunpack.c.l.b16 %v917
    %v1074 = vunpack.c.h.b16 %v917
    %v1075 = vunpack.c.l.b16 %v918
    %v1076 = vunpack.c.l.b16 %v919
    %v1077 = vunpack.c.h.b16 %v919
    %v1078 = vunpack.c.l.b16 %v920
    %v1079 = vunpack.c.h.b16 %v920
    %v1080 = vunpack.c.l.b16 %v921
    %v1081 = vunpack.c.h.b16 %v921
    %v1082 = vunpack.c.l.b16 %v922
    %v1083 = vunpack.c.l.b16 %v923
    %v1084 = vunpack.c.h.b16 %v923
    %v1085 = vunpack.c.l.b16 %v924
    %v1086 = vunpack.c.h.b16 %v924
    %v1087 = vunpack.c.l.b16 %v925
    %v1088 = vunpack.c.h.b16 %v925
    %v1089 = vunpack.c.l.b16 %v926
    %v1090 = vunpack.c.l.b16 %v927
    %v1091 = vunpack.c.h.b16 %v927
    %v1092 = vunpack.c.l.b16 %v928
    %v1093 = vunpack.c.h.b16 %v928
    %v1094 = vunpack.c.l.b16 %v929
    %v1095 = vunpack.c.h.b16 %v929
    %v1096 = vunpack.c.l.b16 %v930
    %v1097 = vunpack.c.l.b16 %v931
    %v1098 = vunpack.c.h.b16 %v931
    %v1099 = vunpack.c.l.b16 %v932
    %v1100 = vunpack.c.h.b16 %v932
    %v1101 = vunpack.c.l.b16 %v933
    %v1102 = vunpack.c.h.b16 %v933
    %v1103 = vunpack.c.l.b16 %v934
    %v1104 = vunpack.c.l.b16 %v935
    %v1105 = vunpack.c.h.b16 %v935
    %v1106 = vunpack.c.l.b16 %v936
    %v1107 = vunpack.c.h.b16 %v936
    %v1108 = vunpack.c.l.b16 %v937
    %v1109 = vunpack.c.h.b16 %v937
    %v1110 = vunpack.c.l.b16 %v938
    %v1111 = vunpack.c.l.b16 %v939
    %v1112 = vunpack.c.h.b16 %v939
    %v1113 = vunpack.c.l.b16 %v940
    %v1114 = vunpack.c.h.b16 %v940
    %v1115 = vunpack.c.l.b16 %v941
    %v1116 = vunpack.c.h.b16 %v941
    %v1117 = vunpack.c.l.b16 %v942
    %v1118 = vunpack.c.l.b16 %v943
    %v1119 = vunpack.c.h.b16 %v943
    %v1120 = vunpack.c.l.b16 %v944
    %v1121 = vunpack.c.h.b16 %v944
    %v1122 = vunpack.c.l.b16 %v945
    %v1123 = vunpack.c.h.b16 %v945
    %v1124 = vunpack.c.l.b16 %v946
    %v1125 = vunpack.c.l.b16 %v947
    %v1126 = vunpack.c.h.b16 %v947
    %v1127 = vunpack.c.l.b16 %v948
    %v1128 = vunpack.c.h.b16 %v948
    %v1129 = vunpack.c.l.b16 %v949
    %v1130 = vunpack.c.h.b16 %v949
    %v1131 = vunpack.c.l.b16 %v950
    %v1132 = vunpack.c.l.b16 %v951
    %v1133 = vunpack.c.h.b16 %v951
    %v1134 = vunpack.c.l.b16 %v952
    %v1135 = vunpack.c.h.b16 %v952
    %v1136 = vunpack.c.l.b16 %v953
    %v1137 = vunpack.c.h.b16 %v953
    %v1138 = vunpack.c.l.b16 %v954
    %v1139 = vunpack.c.l.b16 %v955
    %v1140 = vunpack.c.h.b16 %v955
    %v1141 = vunpack.c.l.b16 %v956
    %v1142 = vunpack.c.h.b16 %v956
    %v1143 = vunpack.c.l.b16 %v957
    %v1144 = vunpack.c.h.b16 %v957
    %v1145 = vunpack.c.l.b16 %v958
    %v1146 = vunpack.c.l.b16 %v959
    %v1147 = vunpack.c.h.b16 %v959
    %v1148 = vunpack.c.l.b16 %v960
    %v1149 = vunpack.c.h.b16 %v960
    %v1150 = vunpack.c.l.b16 %v961
    %v1151 = vunpack.c.h.b16 %v961
    %v1152 = vunpack.c.l.b16 %v962
    %v1153 = vunpack.c.l.b16 %v963
    %v1154 = vunpack.c.h.b16 %v963
    %v1155 = vunpack.c.l.b16 %v964
    %v1156 = vunpack.c.h.b16 %v964
    %v1157 = vunpack.c.l.b16 %v965
    %v1158 = vunpack.c.h.b16 %v965
    %v1159 = vunpack.c.l.b16 %v966
    %v1160 = vpack.c.b16 %v1055, %v1048
    %v1161 = vpack.c.b16 %v1056, %v1049
    %v1162 = vpack.c.b16 %v1057, %v1050
    %v1163 = vpack.c.b16 %v1058, %v1051
    %v1164 = vpack.c.b16 %v1059, %v1052
    %v1165 = vpack.c.b16 %v1060, %v1053
    %v1166 = vpack.c.b16 %v1061, %v1054
    %v1167 = vpack.c.b16 %v1069, %v1062
    %v1168 = vpack.c.b16 %v1070, %v1063
    %v1169 = vpack.c.b16 %v1071, %v1064
    %v1170 = vpack.c.b16 %v1072, %v1065
    %v1171 = vpack.c.b16 %v1073, %v1066
    %v1172 = vpack.c.b16 %v1074, %v1067
    %v1173 = vpack.c.b16 %v1075, %v1068
    %v1174 = vpack.c.b16 %v1083, %v1076
    %v1175 = vpack.c.b16 %v1084, %v1077
    %v1176 = vpack.c.b16 %v1085, %v1078
    %v1177 = vpack.c.b16 %v1086, %v1079
    %v1178 = vpack.c.b16 %v1087, %v1080
    %v1179 = vpack.c.b16 %v1088, %v1081
    %v1180 = vpack.c.b16 %v1089, %v1082
    %v1181 = vpack.c.b16 %v1097, %v1090
    %v1182 = vpack.c.b16 %v1098, %v1091
    %v1183 = vpack.c.b16 %v1099, %v1092
    %v1184 = vpack.c.b16 %v1100, %v1093
    %v1185 = vpack.c.b16 %v1101, %v1094
    %v1186 = vpack.c.b16 %v1102, %v1095
    %v1187 = vpack.c.b16 %v1103, %v1096
    %v1188 = vpack.c.b16 %v1111, %v1104
    %v1189 = vpack.c.b16 %v1112, %v1105
    %v1190 = vpack.c.b16 %v1113, %v1106
    %v1191 = vpack.c.b16 %v1114, %v1107
    %v1192 = vpack.c.b16 %v1115, %v1108
    %v1193 = vpack.c.b16 %v1116, %v1109
    %v1194 = vpack.c.b16 %v1117, %v1110
    %v1195 = vpack.c.b16 %v1125, %v1118
    %v1196 = vpack.c.b16 %v1126, %v1119
    %v1197 = vpack.c.b16 %v1127, %v1120
    %v1198 = vpack.c.b16 %v1128, %v1121
    %v1199 = vpack.c.b16 %v1129, %v1122
    %v1200 = vpack.c.b16 %v1130, %v1123
    %v1201 = vpack.c.b16 %v1131, %v1124
    %v1202 = vpack.c.b16 %v1139, %v1132
    %v1203 = vpack.c.b16 %v1140, %v1133
    %v1204 = vpack.c.b16 %v1141, %v1134
    %v1205 = vpack.c.b16 %v1142, %v1135
    %v1206 = vpack.c.b16 %v1143, %v1136
    %v1207 = vpack.c.b16 %v1144, %v1137
    %v1208 = vpack.c.b16 %v1145, %v1138
    %v1209 = vpack.c.b16 %v1153, %v1146
    %v1210 = vpack.c.b16 %v1154, %v1147
    %v1211 = vpack.c.b16 %v1155, %v1148
    %v1212 = vpack.c.b16 %v1156, %v1149
    %v1213 = vpack.c.b16 %v1157, %v1150
    %v1214 = vpack.c.b16 %v1158, %v1151
    %v1215 = vpack.c.b16 %v1159, %v1152
    %1272 = vmatpush.bf16.msra.mxu0 %v1209
    %1273 = vmatpush.bf16.msra.mxu0 %v1202
    %1274 = vmatpush.bf16.msra.mxu0 %v1195
    %1275 = vmatpush.bf16.msra.mxu0 %v1188
    %1276 = vmatpush.bf16.msra.mxu0 %v1181
    %1277 = vmatpush.bf16.msra.mxu0 %v1174
    %1278 = vmatpush.bf16.msra.mxu0 %v1167
    %1279 = vmatpush.bf16.msra.mxu0 %v1160
    %1280 = vmatmul.bf16.gmra.mxu0 %v968
    %v1281 = vpop.f32.mrf.mxu0
    %v1282 = vadd.f32 %v970, %v1281
    %v1283 = vpop.f32.mrf.mxu0
    %1284 = vdwg.mxu0
    %1285 = vmatpush.bf16.msra.mxu0 %v1210
    %1286 = vmatpush.bf16.msra.mxu0 %v1203
    %1287 = vmatpush.bf16.msra.mxu0 %v1196
    %1288 = vmatpush.bf16.msra.mxu0 %v1189
    %1289 = vmatpush.bf16.msra.mxu0 %v1182
    %1290 = vmatpush.bf16.msra.mxu0 %v1175
    %1291 = vmatpush.bf16.msra.mxu0 %v1168
    %1292 = vmatpush.bf16.msra.mxu0 %v1161
    %1293 = vmatmul.bf16.gmra.mxu0 %v968
    %v1294 = vpop.f32.mrf.mxu0
    %v1295 = vadd.f32 %v971, %v1294
    %v1296 = vpop.f32.mrf.mxu0
    %1297 = vdwg.mxu0
    %1298 = vmatpush.bf16.msra.mxu0 %v1211
    %1299 = vmatpush.bf16.msra.mxu0 %v1204
    %1300 = vmatpush.bf16.msra.mxu0 %v1197
    %1301 = vmatpush.bf16.msra.mxu0 %v1190
    %1302 = vmatpush.bf16.msra.mxu0 %v1183
    %1303 = vmatpush.bf16.msra.mxu0 %v1176
    %1304 = vmatpush.bf16.msra.mxu0 %v1169
    %1305 = vmatpush.bf16.msra.mxu0 %v1162
    %1306 = vmatmul.bf16.gmra.mxu0 %v968
    %v1307 = vpop.f32.mrf.mxu0
    %v1308 = vadd.f32 %v972, %v1307
    %v1309 = vpop.f32.mrf.mxu0
    %1310 = vdwg.mxu0
    %1311 = vmatpush.bf16.msra.mxu0 %v1212
    %1312 = vmatpush.bf16.msra.mxu0 %v1205
    %1313 = vmatpush.bf16.msra.mxu0 %v1198
    %1314 = vmatpush.bf16.msra.mxu0 %v1191
    %1315 = vmatpush.bf16.msra.mxu0 %v1184
    %1316 = vmatpush.bf16.msra.mxu0 %v1177
    %1317 = vmatpush.bf16.msra.mxu0 %v1170
    %1318 = vmatpush.bf16.msra.mxu0 %v1163
    %1319 = vmatmul.bf16.gmra.mxu0 %v968
    %v1320 = vpop.f32.mrf.mxu0
    %v1321 = vadd.f32 %v973, %v1320
    %v1322 = vpop.f32.mrf.mxu0
    %1323 = vdwg.mxu0
    %1324 = vmatpush.bf16.msra.mxu0 %v1213
    %1325 = vmatpush.bf16.msra.mxu0 %v1206
    %1326 = vmatpush.bf16.msra.mxu0 %v1199
    %1327 = vmatpush.bf16.msra.mxu0 %v1192
    %1328 = vmatpush.bf16.msra.mxu0 %v1185
    %1329 = vmatpush.bf16.msra.mxu0 %v1178
    %1330 = vmatpush.bf16.msra.mxu0 %v1171
    %1331 = vmatpush.bf16.msra.mxu0 %v1164
    %1332 = vmatmul.bf16.gmra.mxu0 %v968
    %v1333 = vpop.f32.mrf.mxu0
    %v1334 = vadd.f32 %v974, %v1333
    %v1335 = vpop.f32.mrf.mxu0
    %1336 = vdwg.mxu0
    %1337 = vmatpush.bf16.msra.mxu0 %v1214
    %1338 = vmatpush.bf16.msra.mxu0 %v1207
    %1339 = vmatpush.bf16.msra.mxu0 %v1200
    %1340 = vmatpush.bf16.msra.mxu0 %v1193
    %1341 = vmatpush.bf16.msra.mxu0 %v1186
    %1342 = vmatpush.bf16.msra.mxu0 %v1179
    %1343 = vmatpush.bf16.msra.mxu0 %v1172
    %1344 = vmatpush.bf16.msra.mxu0 %v1165
    %1345 = vmatmul.bf16.gmra.mxu0 %v968
    %v1346 = vpop.f32.mrf.mxu0
    %v1347 = vadd.f32 %v975, %v1346
    %v1348 = vpop.f32.mrf.mxu0
    %1349 = vdwg.mxu0
    %1350 = vmatpush.bf16.msra.mxu0 %v1215
    %1351 = vmatpush.bf16.msra.mxu0 %v1208
    %1352 = vmatpush.bf16.msra.mxu0 %v1201
    %1353 = vmatpush.bf16.msra.mxu0 %v1194
    %1354 = vmatpush.bf16.msra.mxu0 %v1187
    %1355 = vmatpush.bf16.msra.mxu0 %v1180
    %1356 = vmatpush.bf16.msra.mxu0 %v1173
    %1357 = vmatpush.bf16.msra.mxu0 %v1166
    %1358 = vmatmul.bf16.gmra.mxu0 %v968
    %v1359 = vpop.f32.mrf.mxu0
    %v1360 = vadd.f32 %v976, %v1359
    %v1361 = vpop.f32.mrf.mxu0
    %1362 = vdwg.mxu0
    %v1363 = vmul.f32 %v1282, 0.5
    %v1364 = vmul.f32 %v1295, 0.5
    %v1365 = vmul.f32 %v1308, 0.5
    %v1366 = vmul.f32 %v1321, 0.5
    %v1367 = vmul.f32 %v1334, 0.5
    %v1368 = vmul.f32 %v1347, 0.5
    %v1369 = vmul.f32 %v1360, 0.5
    %v1370 = vtanh.pop %v1363
    %v1371 = vtanh.pop %v1364
    %v1372 = vtanh.pop %v1365
    %v1373 = vtanh.pop %v1366
    %v1374 = vtanh.pop %v1367
    %v1375 = vtanh.pop %v1368
    %v1376 = vtanh.pop %v1369
    %v1377 = vmul.f32 %v1370, 0.5
    %v1378 = vmul.f32 %v1371, 0.5
    %v1379 = vmul.f32 %v1372, 0.5
    %v1380 = vmul.f32 %v1373, 0.5
    %v1381 = vmul.f32 %v1374, 0.5
    %v1382 = vmul.f32 %v1375, 0.5
    %v1383 = vmul.f32 %v1376, 0.5
    %v1384 = vadd.f32 %v1377, 0.5
    %v1385 = vadd.f32 %v1378, 0.5
    %v1386 = vadd.f32 %v1379, 0.5
    %v1387 = vadd.f32 %v1380, 0.5
    %v1388 = vadd.f32 %v1381, 0.5
    %v1389 = vadd.f32 %v1382, 0.5
    %v1390 = vadd.f32 %v1383, 0.5
    %v1391 = vpack.c.bf16 %v1385, %v1384
    %v1392 = vpack.c.bf16 %v1387, %v1386
    %v1393 = vpack.c.bf16 %v1389, %v1388
    %v1394 = vpack.c.bf16 %v1390, %v1390
    %1395 = vst [vmem:[#allocation4] sm:$0xff] %v1391
    %1396 = vst [vmem:[#allocation4 + $0x8] sm:$0xff] %v1392
    %1397 = vst [vmem:[#allocation4 + $0x10] sm:$0xff] %v1393
    %vm1398 = vcmask 125952
    %1399 = vst.msk [vmem:[#allocation4 + $0x18] sm:$0xf] %vm1398, %v1394
    // Predicated region
    $region74: #{tpu_custom_call.1} parent=1 // pred_check
      _
    $region75: #{tpu_custom_call.1} parent=1 // pred_check_branch
      %1401 = sbr.rel (0) target = $region77
    $region76: #{tpu_custom_call.1} parent=1 // pred_region
      %1403 = vsyncadd [#allocation3], 0
      %s1405 = sshll.u32 [#allocation2], 4
      %s1406 = int_to_ptr.vmem [resolvable:$true] %s1405
      %s1407 = sshll.u32 %s18, 4
      %s1408 = int_to_ptr.hbm [resolvable:$true] %s1407
      %1410 = dma.vmem_to_hbm [thread:$0]  %s1406, 128, %s1408, [#allocation3]
    $region77: #{tpu_custom_call.1} parent=1 // pred_fallthru
      _
    // Predicated region
    $region78: #{tpu_custom_call.1} parent=1 // pred_check
      _
    $region79: #{tpu_custom_call.1} parent=1 // pred_check_branch
      %1412 = sbr.rel (0) target = $region81
    $region80: #{tpu_custom_call.1} parent=1 // pred_region
      %1414 = vsyncadd [#allocation5], 0
      %s1416 = sshll.u32 [#allocation4], 4
      %s1417 = int_to_ptr.vmem [resolvable:$true] %s1416
      %s1418 = sshll.u32 %s19, 4
      %s1419 = int_to_ptr.hbm [resolvable:$true] %s1418
      %1421 = dma.vmem_to_hbm [thread:$0]  %s1417, 448, %s1419, [#allocation5]
    $region81: #{tpu_custom_call.1} parent=1 // pred_fallthru
      _
    // Predicated region
    $region82: #{tpu_custom_call.1} parent=1 // pred_check
      _
    $region83: #{tpu_custom_call.1} parent=1 // pred_check_branch
      %1423 = sbr.rel (0) target = $region85
    $region84: #{tpu_custom_call.1} parent=1 // pred_region
      %1425 = dma.done [#allocation3], 128
    $region85: #{tpu_custom_call.1} parent=1 // pred_fallthru
      _
    // Predicated region
    $region86: #{tpu_custom_call.1} parent=1 // pred_check
      _
    $region87: #{tpu_custom_call.1} parent=1 // pred_check_branch
      %1427 = sbr.rel (0) target = $region89
    $region88: #{tpu_custom_call.1} parent=1 // pred_region
      %1429 = dma.done [#allocation5], 448
    $region89: #{tpu_custom_call.1} parent=1 // pred_fallthru
      _
    %1430 = vsyncpa [#allocation3], 1
    %1431 = vsyncpa [#allocation5], 1

</llo_original>
